<compile_context>
chip_gen: v6e
topology: v6e:2x2x1
jax: 0.10.0
libtpu: 0.0.40
codegen_flags: <defaults>
</compile_context>

<pallas_src>
import functools

import numpy as np

import jax
import jax.numpy as jnp
from jax.experimental import pallas as pl
from jax.experimental.pallas import tpu as pltpu

KS = 7    # kernel_size
PAD = 3   # padding for kernel_size = 7


def _round_up(x, m):
    return (x + m - 1) // m * m


def _pick_tiles(N, C_pad, HW_pad, itemsize):
    """Choose (b_tile, c_tile, vmem_limit_bytes) from the device's VMEM size."""
    try:
        vmem_cap = int(pltpu.get_tpu_info().vmem_capacity_bytes)
    except Exception:
        vmem_cap = 64 * 1024 * 1024            # conservative (v7x per-TC VMEM)

    in_budget = vmem_cap // 10                 # per-buffer x block (double-buffered)
    acc_budget = vmem_cap // 5                 # persistent f32 accumulators

    # Batch tile: divisor of N, <= 8, accumulators must fit, and prefer >= 2
    # steps on the "parallel" grid axis so both v7x TensorCores get work.
    divs = [d for d in range(1, min(8, N) + 1) if N % d == 0]
    fits = [d for d in divs if 2 * d * 8 * HW_pad * 4 <= acc_budget]
    pref = [d for d in fits if N // d >= 2]
    b_tile = max(pref) if pref else (max(fits) if fits else 1)

    # Channel tile: multiple of 8 dividing C_pad, biggest whose input block
    # fits the per-buffer budget.  (Spatial dim is never tiled, so c_tile=8 is
    # the floor even if a huge HW_pad overshoots the budget.)
    cands = [ct for ct in range(8, C_pad + 1, 8)
             if C_pad % ct == 0 and b_tile * ct * HW_pad * itemsize <= in_budget]
    c_tile = max(cands) if cands else 8

    vmem_limit = int(min(0.7 * vmem_cap, 96 * 1024 * 1024))
    return b_tile, c_tile, vmem_limit


def _spatial_attention_kernel(w_ref, rc_ref, x_ref, o_ref, sum_scr, max_scr, *,
                              C, H, W, HW_pad, b_tile, c_tile, n_k,
                              needs_cmask):
    # w_ref:   (2*KS*KS,) f32 conv taps in SMEM (scalar reads)
    # rc_ref:  (2, HW_pad) i32 [col; row] index map, VMEM (fetched once)
    # x_ref:   (b_tile, c_tile, HW_pad) input block, VMEM
    # o_ref:   (b_tile, 1, HW_pad) output block, VMEM (lane-dense)
    # sum_scr / max_scr: (b_tile, 8, HW_pad) f32 running channel sum / max
    k = pl.program_id(1)
    n_chunks = c_tile // 8

    @pl.when(k == 0)
    def _init():
        sum_scr[...] = jnp.zeros_like(sum_scr)
        max_scr[...] = jnp.full_like(max_scr, -jnp.inf)

    # ---- fused channel sum + max, 8 channels (one tile row) at a time ------
    for b in range(b_tile):
        def body(j, carry, b=b):
            s, m = carry
            c0 = pl.multiple_of(8 * j, 8)
            v = x_ref[b, pl.ds(c0, 8), :].astype(jnp.float32)   # (8, HW_pad)
            if needs_cmask:
                # Channels >= C are zero-padding: neutral for the sum, but must
                # be excluded from the max.
                ch = (k * c_tile + 8 * j
                      + jax.lax.broadcasted_iota(jnp.int32, (8, 1), 0))
                vm = jnp.where(ch < C, v, -jnp.inf)
            else:
                vm = v
            return s + v, jnp.maximum(m, vm)

        s0 = jnp.zeros((8, HW_pad), jnp.float32)
        m0 = jnp.full((8, HW_pad), -jnp.inf, jnp.float32)
        s_loc, m_loc = jax.lax.fori_loop(
            0, n_chunks, body, (s0, m0),
            unroll=True if n_chunks <= 32 else 8)

        sum_scr[b] = sum_scr[b] + s_loc
        max_scr[b] = jnp.maximum(max_scr[b], m_loc)

    # ---- last C-tile: 7x7 "same" conv (roll + mask), sigmoid, store --------
    @pl.when(k == n_k - 1)
    def _finalize():
        inv_c = 1.0 / C

        # 8 -> 1 sublane collapse of the partial accumulators, batch rows
        # stacked on sublanes -> (b_tile, HW_pad) dense slabs for the conv.
        avg = jnp.concatenate(
            [jnp.sum(sum_scr[b], axis=0, keepdims=True) for b in range(b_tile)],
            axis=0) * inv_c
        mx = jnp.concatenate(
            [jnp.max(max_scr[b], axis=0, keepdims=True) for b in range(b_tile)],
            axis=0)

        # Border masks built in-kernel from the col/row index map (nothing big
        # resident in VMEM).  Valid source column: col + kj - PAD in [0, W);
        # valid source row: row + ki - PAD in [0, H).
        col = rc_ref[0:1, :]                                   # (1, HW_pad)
        row = rc_ref[1:2, :]
        cmask = [((col >= PAD - kj) & (col < W + PAD - kj)).astype(jnp.float32)
                 for kj in range(KS)]
        rmask = [((row >= PAD - ki) & (row < H + PAD - ki)).astype(jnp.float32)
                 for ki in range(KS)]

        def lroll(v, shift):
            shift = shift % HW_pad
            return v if shift == 0 else pltpu.roll(v, shift, axis=1)

        # Row offset (ki) outer, column offset (kj) inner; masks zero out both
        # the zero-padded conv border and any roll wrap-around / padded-lane
        # garbage, so only valid flattened source indices contribute.
        acc = jnp.zeros((b_tile, HW_pad), jnp.float32)
        for ki in range(KS):
            a_ki = lroll(avg, (PAD - ki) * W)
            m_ki = lroll(mx, (PAD - ki) * W)
            t = jnp.zeros((b_tile, HW_pad), jnp.float32)
            for kj in range(KS):
                s = (w_ref[ki * KS + kj] * a_ki
                     + w_ref[KS * KS + ki * KS + kj] * m_ki)
                t = t + cmask[kj] * lroll(s, PAD - kj)
            acc = acc + rmask[ki] * t

        o_ref[:, 0, :] = jax.nn.sigmoid(acc).astype(o_ref.dtype)


def spatial_attention(x, weight):
    """x: (N, C, H, W); weight: (1, 2, 7, 7) -> (N, 1, H, W) attention map."""
    N, C, H, W = x.shape
    HW = H * W
    HW_pad = _round_up(HW, 128)        # lane-dense spatial axis
    C_pad = _round_up(C, 8)            # sublane-dense channel chunks
    itemsize = x.dtype.itemsize

    b_tile, c_tile, vmem_limit = _pick_tiles(N, C_pad, HW_pad, itemsize)
    n_k = C_pad // c_tile
    needs_cmask = (C_pad != C)

    x_flat = x.reshape(N, C, HW)
    if C_pad != C or HW_pad != HW:
        x_flat = jnp.pad(x_flat, ((0, 0), (0, C_pad - C), (0, HW_pad - HW)))

    w_flat = weight.reshape(-1).astype(jnp.float32)            # (2*7*7,)

    # Tiny col/row index map (i32) used to build border masks in-kernel.
    p = np.arange(HW_pad)
    rc = jnp.asarray(np.stack([p % W, p // W]).astype(np.int32))  # (2, HW_pad)

    kernel = functools.partial(
        _spatial_attention_kernel,
        C=C, H=H, W=W, HW_pad=HW_pad, b_tile=b_tile, c_tile=c_tile, n_k=n_k,
        needs_cmask=needs_cmask)

    cost = pl.CostEstimate(
        flops=int(N * (2 * C_pad * HW_pad + HW_pad * (4 * KS * KS + 6 * KS))),
        transcendentals=int(N * HW_pad),
        bytes_accessed=int(N * C_pad * HW_pad * itemsize
                           + N * HW_pad * itemsize
                           + rc.size * 4 + w_flat.size * 4),
    )

    out = pl.pallas_call(
        kernel,
        out_shape=jax.ShapeDtypeStruct((N, 1, HW_pad), x.dtype),
        grid_spec=pltpu.PrefetchScalarGridSpec(
            num_scalar_prefetch=0,
            grid=(N // b_tile, n_k),
            in_specs=[
                # small conv weight lives whole in SMEM (scalar tap reads)
                pl.BlockSpec(memory_space=pltpu.MemorySpace.SMEM),
                # col/row index map: same block every step -> fetched once
                pl.BlockSpec((2, HW_pad), lambda nb, k: (0, 0)),
                # input (batch, C-tile) block per grid step
                pl.BlockSpec((b_tile, c_tile, HW_pad), lambda nb, k: (nb, k, 0)),
            ],
            out_specs=pl.BlockSpec((b_tile, 1, HW_pad), lambda nb, k: (nb, 0, 0)),
            scratch_shapes=[
                pltpu.VMEM((b_tile, 8, HW_pad), jnp.float32),   # running sum
                pltpu.VMEM((b_tile, 8, HW_pad), jnp.float32),   # running max
            ],
        ),
        compiler_params=pltpu.CompilerParams(
            dimension_semantics=("parallel", "arbitrary"),
            vmem_limit_bytes=vmem_limit,
        ),
        cost_estimate=cost,
    )(w_flat, rc, x_flat)

    return out[..., :HW].reshape(N, 1, H, W)


def _reference(x, weight):
    """Pure-JAX reference matching the PyTorch module."""
    avg = jnp.mean(x, axis=1, keepdims=True)
    mx = jnp.max(x, axis=1, keepdims=True)
    feat = jnp.concatenate([avg, mx], axis=1)          # (N, 2, H, W)
    y = jax.lax.conv_general_dilated(
        feat, weight,
        window_strides=(1, 1),
        padding=((PAD, PAD), (PAD, PAD)),
        dimension_numbers=("NCHW", "OIHW", "NCHW"),
    )
    return jax.nn.sigmoid(y)


if __name__ == "__main__":
    key = jax.random.PRNGKey(0)
    kx, kw = jax.random.split(key)

    N, C, H, W = 2, 4, 16, 16
    x = jax.random.normal(kx, (N, C, H, W), dtype=jnp.float32)
    # Deterministic conv weight init (Conv2d(2, 1, 7, bias=False) shape).
    bound = 1.0 / (2 * KS * KS) ** 0.5
    weight = jax.random.uniform(
        kw, (1, 2, KS, KS), minval=-bound, maxval=bound, dtype=jnp.float32)

    out = jax.block_until_ready(spatial_attention(x, weight))
    ref = _reference(x, weight)

    assert out.shape == (N, 1, H, W)
    assert jnp.allclose(out, ref, atol=1e-5, rtol=1e-5), "mismatch vs reference"

    print("KERNEL_OK")
</pallas_src>

<mosaic_0001>
module attributes {stable_mosaic.version = 11 : i64} {
  func.func @_spatial_attention_kernel(%arg0: i32, %arg1: i32, %arg2: memref<98xf32, #tpu.memory_space<smem>>, %arg3: memref<2x256xi32, #tpu.memory_space<vmem>>, %arg4: memref<1x8x256xf32, #tpu.memory_space<vmem>>, %arg5: memref<1x1x256xf32, #tpu.memory_space<vmem>>, %arg6: memref<1x8x256xf32, #tpu.memory_space<vmem>>, %arg7: memref<1x8x256xf32, #tpu.memory_space<vmem>>) attributes {dimension_semantics = [#tpu.dimension_semantics<parallel>, #tpu.dimension_semantics<arbitrary>], iteration_bounds = array<i64: 2, 1>, scalar_prefetch = 0 : i64, scratch_operands = 2 : i64, tpu.core_type = #tpu.core_type<tc>, window_params = [{transform_indices = @transform_0, window_bounds = array<i64: 98>}, {pipeline_mode = #tpu.pipeline_mode<synchronous>, transform_indices = @transform_1, window_bounds = array<i64: 2, 256>}, {transform_indices = @transform_2, window_bounds = array<i64: 1, 8, 256>}, {transform_indices = @transform_3, window_bounds = array<i64: 1, 1, 256>}]} {
    %c0_i32 = arith.constant 0 : i32
    %0 = arith.cmpi eq, %arg1, %c0_i32 : i32
    %1 = arith.extui %0 : i1 to i32
    %c0_i32_0 = arith.constant 0 : i32
    %2 = arith.cmpi ne, %1, %c0_i32_0 : i32
    scf.if %2 {
      %cst_21 = arith.constant 0.000000e+00 : f32
      %39 = vector.broadcast %cst_21 : f32 to vector<1x8x256xf32>
      %c0_22 = arith.constant 0 : index
      %c0_23 = arith.constant 0 : index
      %c0_24 = arith.constant 0 : index
      %40 = vector.load %arg6[%c0_22, %c0_23, %c0_24] : memref<1x8x256xf32, #tpu.memory_space<vmem>>, vector<1x8x256xf32>
      tpu.vector_store %arg6[%c0_22, %c0_23, %c0_24], %39 {strides = array<i32>} : memref<1x8x256xf32, #tpu.memory_space<vmem>>, vector<1x8x256xf32>,
      %cst_25 = arith.constant 0xFF800000 : f32
      %41 = vector.broadcast %cst_25 : f32 to vector<1x8x256xf32>
      %c0_26 = arith.constant 0 : index
      %c0_27 = arith.constant 0 : index
      %c0_28 = arith.constant 0 : index
      %42 = vector.load %arg7[%c0_26, %c0_27, %c0_28] : memref<1x8x256xf32, #tpu.memory_space<vmem>>, vector<1x8x256xf32>
      tpu.vector_store %arg7[%c0_26, %c0_27, %c0_28], %41 {strides = array<i32>} : memref<1x8x256xf32, #tpu.memory_space<vmem>>, vector<1x8x256xf32>,
    } else {
    }
    %cst = arith.constant 0.000000e+00 : f32
    %3 = vector.broadcast %cst : f32 to vector<8x256xf32>
    %cst_1 = arith.constant 0xFF800000 : f32
    %4 = vector.broadcast %cst_1 : f32 to vector<8x256xf32>
    %c0_i32_2 = arith.constant 0 : i32
    %c8_i32 = arith.constant 8 : i32
    %5 = arith.muli %c8_i32, %c0_i32_2 : i32
    %6 = tpu.assume_multiple %5, 8 : i32
    %c0 = arith.constant 0 : index
    %7 = arith.index_cast %6 : i32 to index
    %c0_3 = arith.constant 0 : index
    %8 = vector.load %arg4[%c0, %7, %c0_3] : memref<1x8x256xf32, #tpu.memory_space<vmem>>, vector<1x8x256xf32>
    %9 = vector.shape_cast %8 : vector<1x8x256xf32> to vector<8x256xf32>
    %c8_i32_4 = arith.constant 8 : i32
    %10 = arith.muli %arg1, %c8_i32_4 : i32
    %c8_i32_5 = arith.constant 8 : i32
    %11 = arith.muli %c8_i32_5, %c0_i32_2 : i32
    %12 = arith.addi %10, %11 : i32
    %13 = tpu.iota {dimensions = array<i32: 0>} : vector<8x1xi32>
    %14 = vector.broadcast %12 : i32 to vector<8x1xi32>
    %15 = arith.addi %14, %13 : vector<8x1xi32>
    %c4_i32 = arith.constant 4 : i32
    %16 = vector.broadcast %c4_i32 : i32 to vector<8x1xi32>
    %17 = arith.cmpi slt, %15, %16 : vector<8x1xi32>
    %cst_6 = arith.constant 0xFF800000 : f32
    %18 = vector.shape_cast %17 : vector<8x1xi1> to vector<8x1xi1>
    %19 = vector.broadcast %18 : vector<8x1xi1> to vector<8x256xi1>
    %20 = vector.broadcast %cst_6 : f32 to vector<8x256xf32>
    %21 = arith.select %19, %9, %20 : vector<8x256xi1>, vector<8x256xf32>
    %22 = arith.addf %3, %9 : vector<8x256xf32>
    %23 = arith.maximumf %4, %21 : vector<8x256xf32>
    %c1_i32 = arith.constant 1 : i32
    %c0_7 = arith.constant 0 : index
    %c0_8 = arith.constant 0 : index
    %c0_9 = arith.constant 0 : index
    %24 = vector.load %arg6[%c0_7, %c0_8, %c0_9] : memref<1x8x256xf32, #tpu.memory_space<vmem>>, vector<1x8x256xf32>
    %25 = vector.shape_cast %24 : vector<1x8x256xf32> to vector<8x256xf32>
    %26 = arith.addf %25, %22 : vector<8x256xf32>
    %c0_10 = arith.constant 0 : index
    %c0_11 = arith.constant 0 : index
    %c0_12 = arith.constant 0 : index
    %27 = vector.load %arg6[%c0_10, %c0_11, %c0_12] : memref<1x8x256xf32, #tpu.memory_space<vmem>>, vector<1x8x256xf32>
    %28 = vector.shape_cast %27 : vector<1x8x256xf32> to vector<8x256xf32>
    %29 = vector.shape_cast %26 : vector<8x256xf32> to vector<1x8x256xf32>
    tpu.vector_store %arg6[%c0_10, %c0_11, %c0_12], %29 {strides = array<i32>} : memref<1x8x256xf32, #tpu.memory_space<vmem>>, vector<1x8x256xf32>,
    %c0_13 = arith.constant 0 : index
    %c0_14 = arith.constant 0 : index
    %c0_15 = arith.constant 0 : index
    %30 = vector.load %arg7[%c0_13, %c0_14, %c0_15] : memref<1x8x256xf32, #tpu.memory_space<vmem>>, vector<1x8x256xf32>
    %31 = vector.shape_cast %30 : vector<1x8x256xf32> to vector<8x256xf32>
    %32 = arith.maximumf %31, %23 : vector<8x256xf32>
    %c0_16 = arith.constant 0 : index
    %c0_17 = arith.constant 0 : index
    %c0_18 = arith.constant 0 : index
    %33 = vector.load %arg7[%c0_16, %c0_17, %c0_18] : memref<1x8x256xf32, #tpu.memory_space<vmem>>, vector<1x8x256xf32>
    %34 = vector.shape_cast %33 : vector<1x8x256xf32> to vector<8x256xf32>
    %35 = vector.shape_cast %32 : vector<8x256xf32> to vector<1x8x256xf32>
    tpu.vector_store %arg7[%c0_16, %c0_17, %c0_18], %35 {strides = array<i32>} : memref<1x8x256xf32, #tpu.memory_space<vmem>>, vector<1x8x256xf32>,
    %c0_i32_19 = arith.constant 0 : i32
    %36 = arith.cmpi eq, %arg1, %c0_i32_19 : i32
    %37 = arith.extui %36 : i1 to i32
    %c0_i32_20 = arith.constant 0 : i32
    %38 = arith.cmpi ne, %37, %c0_i32_20 : i32
    scf.if %38 {
      %c0_21 = arith.constant 0 : index
      %c0_22 = arith.constant 0 : index
      %c0_23 = arith.constant 0 : index
      %39 = vector.load %arg6[%c0_21, %c0_22, %c0_23] : memref<1x8x256xf32, #tpu.memory_space<vmem>>, vector<1x8x256xf32>
      %40 = vector.shape_cast %39 : vector<1x8x256xf32> to vector<8x256xf32>
      %cst_24 = arith.constant dense<0.000000e+00> : vector<256xf32>
      %41 = vector.multi_reduction <add>, %40, %cst_24 [0] : vector<8x256xf32> to vector<256xf32>
      %42 = vector.shape_cast %41 : vector<256xf32> to vector<1x256xf32>
      %cst_25 = arith.constant 2.500000e-01 : f32
      %43 = vector.broadcast %cst_25 : f32 to vector<1x256xf32>
      %44 = arith.mulf %42, %43 : vector<1x256xf32>
      %c0_26 = arith.constant 0 : index
      %c0_27 = arith.constant 0 : index
      %c0_28 = arith.constant 0 : index
      %45 = vector.load %arg7[%c0_26, %c0_27, %c0_28] : memref<1x8x256xf32, #tpu.memory_space<vmem>>, vector<1x8x256xf32>
      %46 = vector.shape_cast %45 : vector<1x8x256xf32> to vector<8x256xf32>
      %cst_29 = arith.constant dense<0xFF800000> : vector<256xf32>
      %47 = vector.multi_reduction <maximumf>, %46, %cst_29 [0] : vector<8x256xf32> to vector<256xf32>
      %48 = vector.shape_cast %47 : vector<256xf32> to vector<1x256xf32>
      %c0_30 = arith.constant 0 : index
      %c0_31 = arith.constant 0 : index
      %49 = vector.load %arg3[%c0_30, %c0_31] : memref<2x256xi32, #tpu.memory_space<vmem>>, vector<1x256xi32>
      %c1 = arith.constant 1 : index
      %c0_32 = arith.constant 0 : index
      %50 = vector.load %arg3[%c1, %c0_32] : memref<2x256xi32, #tpu.memory_space<vmem>>, vector<1x256xi32>
      %c3_i32 = arith.constant 3 : i32
      %51 = vector.broadcast %c3_i32 : i32 to vector<1x256xi32>
      %52 = arith.cmpi sge, %49, %51 : vector<1x256xi32>
      %c19_i32 = arith.constant 19 : i32
      %53 = vector.broadcast %c19_i32 : i32 to vector<1x256xi32>
      %54 = arith.cmpi slt, %49, %53 : vector<1x256xi32>
      %55 = arith.andi %52, %54 : vector<1x256xi1>
      %56 = arith.extui %55 : vector<1x256xi1> to vector<1x256xi32>
      %57 = arith.sitofp %56 : vector<1x256xi32> to vector<1x256xf32>
      %c2_i32 = arith.constant 2 : i32
      %58 = vector.broadcast %c2_i32 : i32 to vector<1x256xi32>
      %59 = arith.cmpi sge, %49, %58 : vector<1x256xi32>
      %c18_i32 = arith.constant 18 : i32
      %60 = vector.broadcast %c18_i32 : i32 to vector<1x256xi32>
      %61 = arith.cmpi slt, %49, %60 : vector<1x256xi32>
      %62 = arith.andi %59, %61 : vector<1x256xi1>
      %63 = arith.extui %62 : vector<1x256xi1> to vector<1x256xi32>
      %64 = arith.sitofp %63 : vector<1x256xi32> to vector<1x256xf32>
      %c1_i32_33 = arith.constant 1 : i32
      %65 = vector.broadcast %c1_i32_33 : i32 to vector<1x256xi32>
      %66 = arith.cmpi sge, %49, %65 : vector<1x256xi32>
      %c17_i32 = arith.constant 17 : i32
      %67 = vector.broadcast %c17_i32 : i32 to vector<1x256xi32>
      %68 = arith.cmpi slt, %49, %67 : vector<1x256xi32>
      %69 = arith.andi %66, %68 : vector<1x256xi1>
      %70 = arith.extui %69 : vector<1x256xi1> to vector<1x256xi32>
      %71 = arith.sitofp %70 : vector<1x256xi32> to vector<1x256xf32>
      %c0_i32_34 = arith.constant 0 : i32
      %72 = vector.broadcast %c0_i32_34 : i32 to vector<1x256xi32>
      %73 = arith.cmpi sge, %49, %72 : vector<1x256xi32>
      %c16_i32 = arith.constant 16 : i32
      %74 = vector.broadcast %c16_i32 : i32 to vector<1x256xi32>
      %75 = arith.cmpi slt, %49, %74 : vector<1x256xi32>
      %76 = arith.andi %73, %75 : vector<1x256xi1>
      %77 = arith.extui %76 : vector<1x256xi1> to vector<1x256xi32>
      %78 = arith.sitofp %77 : vector<1x256xi32> to vector<1x256xf32>
      %c-1_i32 = arith.constant -1 : i32
      %79 = vector.broadcast %c-1_i32 : i32 to vector<1x256xi32>
      %80 = arith.cmpi sge, %49, %79 : vector<1x256xi32>
      %c15_i32 = arith.constant 15 : i32
      %81 = vector.broadcast %c15_i32 : i32 to vector<1x256xi32>
      %82 = arith.cmpi slt, %49, %81 : vector<1x256xi32>
      %83 = arith.andi %80, %82 : vector<1x256xi1>
      %84 = arith.extui %83 : vector<1x256xi1> to vector<1x256xi32>
      %85 = arith.sitofp %84 : vector<1x256xi32> to vector<1x256xf32>
      %c-2_i32 = arith.constant -2 : i32
      %86 = vector.broadcast %c-2_i32 : i32 to vector<1x256xi32>
      %87 = arith.cmpi sge, %49, %86 : vector<1x256xi32>
      %c14_i32 = arith.constant 14 : i32
      %88 = vector.broadcast %c14_i32 : i32 to vector<1x256xi32>
      %89 = arith.cmpi slt, %49, %88 : vector<1x256xi32>
      %90 = arith.andi %87, %89 : vector<1x256xi1>
      %91 = arith.extui %90 : vector<1x256xi1> to vector<1x256xi32>
      %92 = arith.sitofp %91 : vector<1x256xi32> to vector<1x256xf32>
      %c-3_i32 = arith.constant -3 : i32
      %93 = vector.broadcast %c-3_i32 : i32 to vector<1x256xi32>
      %94 = arith.cmpi sge, %49, %93 : vector<1x256xi32>
      %c13_i32 = arith.constant 13 : i32
      %95 = vector.broadcast %c13_i32 : i32 to vector<1x256xi32>
      %96 = arith.cmpi slt, %49, %95 : vector<1x256xi32>
      %97 = arith.andi %94, %96 : vector<1x256xi1>
      %98 = arith.extui %97 : vector<1x256xi1> to vector<1x256xi32>
      %99 = arith.sitofp %98 : vector<1x256xi32> to vector<1x256xf32>
      %c3_i32_35 = arith.constant 3 : i32
      %100 = vector.broadcast %c3_i32_35 : i32 to vector<1x256xi32>
      %101 = arith.cmpi sge, %50, %100 : vector<1x256xi32>
      %c19_i32_36 = arith.constant 19 : i32
      %102 = vector.broadcast %c19_i32_36 : i32 to vector<1x256xi32>
      %103 = arith.cmpi slt, %50, %102 : vector<1x256xi32>
      %104 = arith.andi %101, %103 : vector<1x256xi1>
      %105 = arith.extui %104 : vector<1x256xi1> to vector<1x256xi32>
      %106 = arith.sitofp %105 : vector<1x256xi32> to vector<1x256xf32>
      %c2_i32_37 = arith.constant 2 : i32
      %107 = vector.broadcast %c2_i32_37 : i32 to vector<1x256xi32>
      %108 = arith.cmpi sge, %50, %107 : vector<1x256xi32>
      %c18_i32_38 = arith.constant 18 : i32
      %109 = vector.broadcast %c18_i32_38 : i32 to vector<1x256xi32>
      %110 = arith.cmpi slt, %50, %109 : vector<1x256xi32>
      %111 = arith.andi %108, %110 : vector<1x256xi1>
      %112 = arith.extui %111 : vector<1x256xi1> to vector<1x256xi32>
      %113 = arith.sitofp %112 : vector<1x256xi32> to vector<1x256xf32>
      %c1_i32_39 = arith.constant 1 : i32
      %114 = vector.broadcast %c1_i32_39 : i32 to vector<1x256xi32>
      %115 = arith.cmpi sge, %50, %114 : vector<1x256xi32>
      %c17_i32_40 = arith.constant 17 : i32
      %116 = vector.broadcast %c17_i32_40 : i32 to vector<1x256xi32>
      %117 = arith.cmpi slt, %50, %116 : vector<1x256xi32>
      %118 = arith.andi %115, %117 : vector<1x256xi1>
      %119 = arith.extui %118 : vector<1x256xi1> to vector<1x256xi32>
      %120 = arith.sitofp %119 : vector<1x256xi32> to vector<1x256xf32>
      %c0_i32_41 = arith.constant 0 : i32
      %121 = vector.broadcast %c0_i32_41 : i32 to vector<1x256xi32>
      %122 = arith.cmpi sge, %50, %121 : vector<1x256xi32>
      %c16_i32_42 = arith.constant 16 : i32
      %123 = vector.broadcast %c16_i32_42 : i32 to vector<1x256xi32>
      %124 = arith.cmpi slt, %50, %123 : vector<1x256xi32>
      %125 = arith.andi %122, %124 : vector<1x256xi1>
      %126 = arith.extui %125 : vector<1x256xi1> to vector<1x256xi32>
      %127 = arith.sitofp %126 : vector<1x256xi32> to vector<1x256xf32>
      %c-1_i32_43 = arith.constant -1 : i32
      %128 = vector.broadcast %c-1_i32_43 : i32 to vector<1x256xi32>
      %129 = arith.cmpi sge, %50, %128 : vector<1x256xi32>
      %c15_i32_44 = arith.constant 15 : i32
      %130 = vector.broadcast %c15_i32_44 : i32 to vector<1x256xi32>
      %131 = arith.cmpi slt, %50, %130 : vector<1x256xi32>
      %132 = arith.andi %129, %131 : vector<1x256xi1>
      %133 = arith.extui %132 : vector<1x256xi1> to vector<1x256xi32>
      %134 = arith.sitofp %133 : vector<1x256xi32> to vector<1x256xf32>
      %c-2_i32_45 = arith.constant -2 : i32
      %135 = vector.broadcast %c-2_i32_45 : i32 to vector<1x256xi32>
      %136 = arith.cmpi sge, %50, %135 : vector<1x256xi32>
      %c14_i32_46 = arith.constant 14 : i32
      %137 = vector.broadcast %c14_i32_46 : i32 to vector<1x256xi32>
      %138 = arith.cmpi slt, %50, %137 : vector<1x256xi32>
      %139 = arith.andi %136, %138 : vector<1x256xi1>
      %140 = arith.extui %139 : vector<1x256xi1> to vector<1x256xi32>
      %141 = arith.sitofp %140 : vector<1x256xi32> to vector<1x256xf32>
      %c-3_i32_47 = arith.constant -3 : i32
      %142 = vector.broadcast %c-3_i32_47 : i32 to vector<1x256xi32>
      %143 = arith.cmpi sge, %50, %142 : vector<1x256xi32>
      %c13_i32_48 = arith.constant 13 : i32
      %144 = vector.broadcast %c13_i32_48 : i32 to vector<1x256xi32>
      %145 = arith.cmpi slt, %50, %144 : vector<1x256xi32>
      %146 = arith.andi %143, %145 : vector<1x256xi1>
      %147 = arith.extui %146 : vector<1x256xi1> to vector<1x256xi32>
      %148 = arith.sitofp %147 : vector<1x256xi32> to vector<1x256xf32>
      %cst_49 = arith.constant 0.000000e+00 : f32
      %149 = vector.broadcast %cst_49 : f32 to vector<1x256xf32>
      %c48_i32 = arith.constant 48 : i32
      %150 = tpu.dynamic_rotate %44 by %c48_i32 dim 1 : vector<1x256xf32>, i32 -> vector<1x256xf32>
      %c48_i32_50 = arith.constant 48 : i32
      %151 = tpu.dynamic_rotate %48 by %c48_i32_50 dim 1 : vector<1x256xf32>, i32 -> vector<1x256xf32>
      %cst_51 = arith.constant 0.000000e+00 : f32
      %152 = vector.broadcast %cst_51 : f32 to vector<1x256xf32>
      %c0_52 = arith.constant 0 : index
      %153 = memref.load %arg2[%c0_52] : memref<98xf32, #tpu.memory_space<smem>>
      %154 = vector.broadcast %153 : f32 to vector<1x256xf32>
      %155 = arith.mulf %154, %150 : vector<1x256xf32>
      %c49 = arith.constant 49 : index
      %156 = memref.load %arg2[%c49] : memref<98xf32, #tpu.memory_space<smem>>
      %157 = vector.broadcast %156 : f32 to vector<1x256xf32>
      %158 = arith.mulf %157, %151 : vector<1x256xf32>
      %159 = arith.addf %155, %158 : vector<1x256xf32>
      %c3_i32_53 = arith.constant 3 : i32
      %160 = tpu.dynamic_rotate %159 by %c3_i32_53 dim 1 : vector<1x256xf32>, i32 -> vector<1x256xf32>
      %161 = arith.mulf %57, %160 : vector<1x256xf32>
      %162 = arith.addf %152, %161 : vector<1x256xf32>
      %c1_54 = arith.constant 1 : index
      %163 = memref.load %arg2[%c1_54] : memref<98xf32, #tpu.memory_space<smem>>
      %164 = vector.broadcast %163 : f32 to vector<1x256xf32>
      %165 = arith.mulf %164, %150 : vector<1x256xf32>
      %c50 = arith.constant 50 : index
      %166 = memref.load %arg2[%c50] : memref<98xf32, #tpu.memory_space<smem>>
      %167 = vector.broadcast %166 : f32 to vector<1x256xf32>
      %168 = arith.mulf %167, %151 : vector<1x256xf32>
      %169 = arith.addf %165, %168 : vector<1x256xf32>
      %c2_i32_55 = arith.constant 2 : i32
      %170 = tpu.dynamic_rotate %169 by %c2_i32_55 dim 1 : vector<1x256xf32>, i32 -> vector<1x256xf32>
      %171 = arith.mulf %64, %170 : vector<1x256xf32>
      %172 = arith.addf %162, %171 : vector<1x256xf32>
      %c2 = arith.constant 2 : index
      %173 = memref.load %arg2[%c2] : memref<98xf32, #tpu.memory_space<smem>>
      %174 = vector.broadcast %173 : f32 to vector<1x256xf32>
      %175 = arith.mulf %174, %150 : vector<1x256xf32>
      %c51 = arith.constant 51 : index
      %176 = memref.load %arg2[%c51] : memref<98xf32, #tpu.memory_space<smem>>
      %177 = vector.broadcast %176 : f32 to vector<1x256xf32>
      %178 = arith.mulf %177, %151 : vector<1x256xf32>
      %179 = arith.addf %175, %178 : vector<1x256xf32>
      %c1_i32_56 = arith.constant 1 : i32
      %180 = tpu.dynamic_rotate %179 by %c1_i32_56 dim 1 : vector<1x256xf32>, i32 -> vector<1x256xf32>
      %181 = arith.mulf %71, %180 : vector<1x256xf32>
      %182 = arith.addf %172, %181 : vector<1x256xf32>
      %c3 = arith.constant 3 : index
      %183 = memref.load %arg2[%c3] : memref<98xf32, #tpu.memory_space<smem>>
      %184 = vector.broadcast %183 : f32 to vector<1x256xf32>
      %185 = arith.mulf %184, %150 : vector<1x256xf32>
      %c52 = arith.constant 52 : index
      %186 = memref.load %arg2[%c52] : memref<98xf32, #tpu.memory_space<smem>>
      %187 = vector.broadcast %186 : f32 to vector<1x256xf32>
      %188 = arith.mulf %187, %151 : vector<1x256xf32>
      %189 = arith.addf %185, %188 : vector<1x256xf32>
      %190 = arith.mulf %78, %189 : vector<1x256xf32>
      %191 = arith.addf %182, %190 : vector<1x256xf32>
      %c4 = arith.constant 4 : index
      %192 = memref.load %arg2[%c4] : memref<98xf32, #tpu.memory_space<smem>>
      %193 = vector.broadcast %192 : f32 to vector<1x256xf32>
      %194 = arith.mulf %193, %150 : vector<1x256xf32>
      %c53 = arith.constant 53 : index
      %195 = memref.load %arg2[%c53] : memref<98xf32, #tpu.memory_space<smem>>
      %196 = vector.broadcast %195 : f32 to vector<1x256xf32>
      %197 = arith.mulf %196, %151 : vector<1x256xf32>
      %198 = arith.addf %194, %197 : vector<1x256xf32>
      %c255_i32 = arith.constant 255 : i32
      %199 = tpu.dynamic_rotate %198 by %c255_i32 dim 1 : vector<1x256xf32>, i32 -> vector<1x256xf32>
      %200 = arith.mulf %85, %199 : vector<1x256xf32>
      %201 = arith.addf %191, %200 : vector<1x256xf32>
      %c5 = arith.constant 5 : index
      %202 = memref.load %arg2[%c5] : memref<98xf32, #tpu.memory_space<smem>>
      %203 = vector.broadcast %202 : f32 to vector<1x256xf32>
      %204 = arith.mulf %203, %150 : vector<1x256xf32>
      %c54 = arith.constant 54 : index
      %205 = memref.load %arg2[%c54] : memref<98xf32, #tpu.memory_space<smem>>
      %206 = vector.broadcast %205 : f32 to vector<1x256xf32>
      %207 = arith.mulf %206, %151 : vector<1x256xf32>
      %208 = arith.addf %204, %207 : vector<1x256xf32>
      %c254_i32 = arith.constant 254 : i32
      %209 = tpu.dynamic_rotate %208 by %c254_i32 dim 1 : vector<1x256xf32>, i32 -> vector<1x256xf32>
      %210 = arith.mulf %92, %209 : vector<1x256xf32>
      %211 = arith.addf %201, %210 : vector<1x256xf32>
      %c6 = arith.constant 6 : index
      %212 = memref.load %arg2[%c6] : memref<98xf32, #tpu.memory_space<smem>>
      %213 = vector.broadcast %212 : f32 to vector<1x256xf32>
      %214 = arith.mulf %213, %150 : vector<1x256xf32>
      %c55 = arith.constant 55 : index
      %215 = memref.load %arg2[%c55] : memref<98xf32, #tpu.memory_space<smem>>
      %216 = vector.broadcast %215 : f32 to vector<1x256xf32>
      %217 = arith.mulf %216, %151 : vector<1x256xf32>
      %218 = arith.addf %214, %217 : vector<1x256xf32>
      %c253_i32 = arith.constant 253 : i32
      %219 = tpu.dynamic_rotate %218 by %c253_i32 dim 1 : vector<1x256xf32>, i32 -> vector<1x256xf32>
      %220 = arith.mulf %99, %219 : vector<1x256xf32>
      %221 = arith.addf %211, %220 : vector<1x256xf32>
      %222 = arith.mulf %106, %221 : vector<1x256xf32>
      %223 = arith.addf %149, %222 : vector<1x256xf32>
      %c32_i32 = arith.constant 32 : i32
      %224 = tpu.dynamic_rotate %44 by %c32_i32 dim 1 : vector<1x256xf32>, i32 -> vector<1x256xf32>
      %c32_i32_57 = arith.constant 32 : i32
      %225 = tpu.dynamic_rotate %48 by %c32_i32_57 dim 1 : vector<1x256xf32>, i32 -> vector<1x256xf32>
      %cst_58 = arith.constant 0.000000e+00 : f32
      %226 = vector.broadcast %cst_58 : f32 to vector<1x256xf32>
      %c7 = arith.constant 7 : index
      %227 = memref.load %arg2[%c7] : memref<98xf32, #tpu.memory_space<smem>>
      %228 = vector.broadcast %227 : f32 to vector<1x256xf32>
      %229 = arith.mulf %228, %224 : vector<1x256xf32>
      %c56 = arith.constant 56 : index
      %230 = memref.load %arg2[%c56] : memref<98xf32, #tpu.memory_space<smem>>
      %231 = vector.broadcast %230 : f32 to vector<1x256xf32>
      %232 = arith.mulf %231, %225 : vector<1x256xf32>
      %233 = arith.addf %229, %232 : vector<1x256xf32>
      %c3_i32_59 = arith.constant 3 : i32
      %234 = tpu.dynamic_rotate %233 by %c3_i32_59 dim 1 : vector<1x256xf32>, i32 -> vector<1x256xf32>
      %235 = arith.mulf %57, %234 : vector<1x256xf32>
      %236 = arith.addf %226, %235 : vector<1x256xf32>
      %c8 = arith.constant 8 : index
      %237 = memref.load %arg2[%c8] : memref<98xf32, #tpu.memory_space<smem>>
      %238 = vector.broadcast %237 : f32 to vector<1x256xf32>
      %239 = arith.mulf %238, %224 : vector<1x256xf32>
      %c57 = arith.constant 57 : index
      %240 = memref.load %arg2[%c57] : memref<98xf32, #tpu.memory_space<smem>>
      %241 = vector.broadcast %240 : f32 to vector<1x256xf32>
      %242 = arith.mulf %241, %225 : vector<1x256xf32>
      %243 = arith.addf %239, %242 : vector<1x256xf32>
      %c2_i32_60 = arith.constant 2 : i32
      %244 = tpu.dynamic_rotate %243 by %c2_i32_60 dim 1 : vector<1x256xf32>, i32 -> vector<1x256xf32>
      %245 = arith.mulf %64, %244 : vector<1x256xf32>
      %246 = arith.addf %236, %245 : vector<1x256xf32>
      %c9 = arith.constant 9 : index
      %247 = memref.load %arg2[%c9] : memref<98xf32, #tpu.memory_space<smem>>
      %248 = vector.broadcast %247 : f32 to vector<1x256xf32>
      %249 = arith.mulf %248, %224 : vector<1x256xf32>
      %c58 = arith.constant 58 : index
      %250 = memref.load %arg2[%c58] : memref<98xf32, #tpu.memory_space<smem>>
      %251 = vector.broadcast %250 : f32 to vector<1x256xf32>
      %252 = arith.mulf %251, %225 : vector<1x256xf32>
      %253 = arith.addf %249, %252 : vector<1x256xf32>
      %c1_i32_61 = arith.constant 1 : i32
      %254 = tpu.dynamic_rotate %253 by %c1_i32_61 dim 1 : vector<1x256xf32>, i32 -> vector<1x256xf32>
      %255 = arith.mulf %71, %254 : vector<1x256xf32>
      %256 = arith.addf %246, %255 : vector<1x256xf32>
      %c10 = arith.constant 10 : index
      %257 = memref.load %arg2[%c10] : memref<98xf32, #tpu.memory_space<smem>>
      %258 = vector.broadcast %257 : f32 to vector<1x256xf32>
      %259 = arith.mulf %258, %224 : vector<1x256xf32>
      %c59 = arith.constant 59 : index
      %260 = memref.load %arg2[%c59] : memref<98xf32, #tpu.memory_space<smem>>
      %261 = vector.broadcast %260 : f32 to vector<1x256xf32>
      %262 = arith.mulf %261, %225 : vector<1x256xf32>
      %263 = arith.addf %259, %262 : vector<1x256xf32>
      %264 = arith.mulf %78, %263 : vector<1x256xf32>
      %265 = arith.addf %256, %264 : vector<1x256xf32>
      %c11 = arith.constant 11 : index
      %266 = memref.load %arg2[%c11] : memref<98xf32, #tpu.memory_space<smem>>
      %267 = vector.broadcast %266 : f32 to vector<1x256xf32>
      %268 = arith.mulf %267, %224 : vector<1x256xf32>
      %c60 = arith.constant 60 : index
      %269 = memref.load %arg2[%c60] : memref<98xf32, #tpu.memory_space<smem>>
      %270 = vector.broadcast %269 : f32 to vector<1x256xf32>
      %271 = arith.mulf %270, %225 : vector<1x256xf32>
      %272 = arith.addf %268, %271 : vector<1x256xf32>
      %c255_i32_62 = arith.constant 255 : i32
      %273 = tpu.dynamic_rotate %272 by %c255_i32_62 dim 1 : vector<1x256xf32>, i32 -> vector<1x256xf32>
      %274 = arith.mulf %85, %273 : vector<1x256xf32>
      %275 = arith.addf %265, %274 : vector<1x256xf32>
      %c12 = arith.constant 12 : index
      %276 = memref.load %arg2[%c12] : memref<98xf32, #tpu.memory_space<smem>>
      %277 = vector.broadcast %276 : f32 to vector<1x256xf32>
      %278 = arith.mulf %277, %224 : vector<1x256xf32>
      %c61 = arith.constant 61 : index
      %279 = memref.load %arg2[%c61] : memref<98xf32, #tpu.memory_space<smem>>
      %280 = vector.broadcast %279 : f32 to vector<1x256xf32>
      %281 = arith.mulf %280, %225 : vector<1x256xf32>
      %282 = arith.addf %278, %281 : vector<1x256xf32>
      %c254_i32_63 = arith.constant 254 : i32
      %283 = tpu.dynamic_rotate %282 by %c254_i32_63 dim 1 : vector<1x256xf32>, i32 -> vector<1x256xf32>
      %284 = arith.mulf %92, %283 : vector<1x256xf32>
      %285 = arith.addf %275, %284 : vector<1x256xf32>
      %c13 = arith.constant 13 : index
      %286 = memref.load %arg2[%c13] : memref<98xf32, #tpu.memory_space<smem>>
      %287 = vector.broadcast %286 : f32 to vector<1x256xf32>
      %288 = arith.mulf %287, %224 : vector<1x256xf32>
      %c62 = arith.constant 62 : index
      %289 = memref.load %arg2[%c62] : memref<98xf32, #tpu.memory_space<smem>>
      %290 = vector.broadcast %289 : f32 to vector<1x256xf32>
      %291 = arith.mulf %290, %225 : vector<1x256xf32>
      %292 = arith.addf %288, %291 : vector<1x256xf32>
      %c253_i32_64 = arith.constant 253 : i32
      %293 = tpu.dynamic_rotate %292 by %c253_i32_64 dim 1 : vector<1x256xf32>, i32 -> vector<1x256xf32>
      %294 = arith.mulf %99, %293 : vector<1x256xf32>
      %295 = arith.addf %285, %294 : vector<1x256xf32>
      %296 = arith.mulf %113, %295 : vector<1x256xf32>
      %297 = arith.addf %223, %296 : vector<1x256xf32>
      %c16_i32_65 = arith.constant 16 : i32
      %298 = tpu.dynamic_rotate %44 by %c16_i32_65 dim 1 : vector<1x256xf32>, i32 -> vector<1x256xf32>
      %c16_i32_66 = arith.constant 16 : i32
      %299 = tpu.dynamic_rotate %48 by %c16_i32_66 dim 1 : vector<1x256xf32>, i32 -> vector<1x256xf32>
      %cst_67 = arith.constant 0.000000e+00 : f32
      %300 = vector.broadcast %cst_67 : f32 to vector<1x256xf32>
      %c14 = arith.constant 14 : index
      %301 = memref.load %arg2[%c14] : memref<98xf32, #tpu.memory_space<smem>>
      %302 = vector.broadcast %301 : f32 to vector<1x256xf32>
      %303 = arith.mulf %302, %298 : vector<1x256xf32>
      %c63 = arith.constant 63 : index
      %304 = memref.load %arg2[%c63] : memref<98xf32, #tpu.memory_space<smem>>
      %305 = vector.broadcast %304 : f32 to vector<1x256xf32>
      %306 = arith.mulf %305, %299 : vector<1x256xf32>
      %307 = arith.addf %303, %306 : vector<1x256xf32>
      %c3_i32_68 = arith.constant 3 : i32
      %308 = tpu.dynamic_rotate %307 by %c3_i32_68 dim 1 : vector<1x256xf32>, i32 -> vector<1x256xf32>
      %309 = arith.mulf %57, %308 : vector<1x256xf32>
      %310 = arith.addf %300, %309 : vector<1x256xf32>
      %c15 = arith.constant 15 : index
      %311 = memref.load %arg2[%c15] : memref<98xf32, #tpu.memory_space<smem>>
      %312 = vector.broadcast %311 : f32 to vector<1x256xf32>
      %313 = arith.mulf %312, %298 : vector<1x256xf32>
      %c64 = arith.constant 64 : index
      %314 = memref.load %arg2[%c64] : memref<98xf32, #tpu.memory_space<smem>>
      %315 = vector.broadcast %314 : f32 to vector<1x256xf32>
      %316 = arith.mulf %315, %299 : vector<1x256xf32>
      %317 = arith.addf %313, %316 : vector<1x256xf32>
      %c2_i32_69 = arith.constant 2 : i32
      %318 = tpu.dynamic_rotate %317 by %c2_i32_69 dim 1 : vector<1x256xf32>, i32 -> vector<1x256xf32>
      %319 = arith.mulf %64, %318 : vector<1x256xf32>
      %320 = arith.addf %310, %319 : vector<1x256xf32>
      %c16 = arith.constant 16 : index
      %321 = memref.load %arg2[%c16] : memref<98xf32, #tpu.memory_space<smem>>
      %322 = vector.broadcast %321 : f32 to vector<1x256xf32>
      %323 = arith.mulf %322, %298 : vector<1x256xf32>
      %c65 = arith.constant 65 : index
      %324 = memref.load %arg2[%c65] : memref<98xf32, #tpu.memory_space<smem>>
      %325 = vector.broadcast %324 : f32 to vector<1x256xf32>
      %326 = arith.mulf %325, %299 : vector<1x256xf32>
      %327 = arith.addf %323, %326 : vector<1x256xf32>
      %c1_i32_70 = arith.constant 1 : i32
      %328 = tpu.dynamic_rotate %327 by %c1_i32_70 dim 1 : vector<1x256xf32>, i32 -> vector<1x256xf32>
      %329 = arith.mulf %71, %328 : vector<1x256xf32>
      %330 = arith.addf %320, %329 : vector<1x256xf32>
      %c17 = arith.constant 17 : index
      %331 = memref.load %arg2[%c17] : memref<98xf32, #tpu.memory_space<smem>>
      %332 = vector.broadcast %331 : f32 to vector<1x256xf32>
      %333 = arith.mulf %332, %298 : vector<1x256xf32>
      %c66 = arith.constant 66 : index
      %334 = memref.load %arg2[%c66] : memref<98xf32, #tpu.memory_space<smem>>
      %335 = vector.broadcast %334 : f32 to vector<1x256xf32>
      %336 = arith.mulf %335, %299 : vector<1x256xf32>
      %337 = arith.addf %333, %336 : vector<1x256xf32>
      %338 = arith.mulf %78, %337 : vector<1x256xf32>
      %339 = arith.addf %330, %338 : vector<1x256xf32>
      %c18 = arith.constant 18 : index
      %340 = memref.load %arg2[%c18] : memref<98xf32, #tpu.memory_space<smem>>
      %341 = vector.broadcast %340 : f32 to vector<1x256xf32>
      %342 = arith.mulf %341, %298 : vector<1x256xf32>
      %c67 = arith.constant 67 : index
      %343 = memref.load %arg2[%c67] : memref<98xf32, #tpu.memory_space<smem>>
      %344 = vector.broadcast %343 : f32 to vector<1x256xf32>
      %345 = arith.mulf %344, %299 : vector<1x256xf32>
      %346 = arith.addf %342, %345 : vector<1x256xf32>
      %c255_i32_71 = arith.constant 255 : i32
      %347 = tpu.dynamic_rotate %346 by %c255_i32_71 dim 1 : vector<1x256xf32>, i32 -> vector<1x256xf32>
      %348 = arith.mulf %85, %347 : vector<1x256xf32>
      %349 = arith.addf %339, %348 : vector<1x256xf32>
      %c19 = arith.constant 19 : index
      %350 = memref.load %arg2[%c19] : memref<98xf32, #tpu.memory_space<smem>>
      %351 = vector.broadcast %350 : f32 to vector<1x256xf32>
      %352 = arith.mulf %351, %298 : vector<1x256xf32>
      %c68 = arith.constant 68 : index
      %353 = memref.load %arg2[%c68] : memref<98xf32, #tpu.memory_space<smem>>
      %354 = vector.broadcast %353 : f32 to vector<1x256xf32>
      %355 = arith.mulf %354, %299 : vector<1x256xf32>
      %356 = arith.addf %352, %355 : vector<1x256xf32>
      %c254_i32_72 = arith.constant 254 : i32
      %357 = tpu.dynamic_rotate %356 by %c254_i32_72 dim 1 : vector<1x256xf32>, i32 -> vector<1x256xf32>
      %358 = arith.mulf %92, %357 : vector<1x256xf32>
      %359 = arith.addf %349, %358 : vector<1x256xf32>
      %c20 = arith.constant 20 : index
      %360 = memref.load %arg2[%c20] : memref<98xf32, #tpu.memory_space<smem>>
      %361 = vector.broadcast %360 : f32 to vector<1x256xf32>
      %362 = arith.mulf %361, %298 : vector<1x256xf32>
      %c69 = arith.constant 69 : index
      %363 = memref.load %arg2[%c69] : memref<98xf32, #tpu.memory_space<smem>>
      %364 = vector.broadcast %363 : f32 to vector<1x256xf32>
      %365 = arith.mulf %364, %299 : vector<1x256xf32>
      %366 = arith.addf %362, %365 : vector<1x256xf32>
      %c253_i32_73 = arith.constant 253 : i32
      %367 = tpu.dynamic_rotate %366 by %c253_i32_73 dim 1 : vector<1x256xf32>, i32 -> vector<1x256xf32>
      %368 = arith.mulf %99, %367 : vector<1x256xf32>
      %369 = arith.addf %359, %368 : vector<1x256xf32>
      %370 = arith.mulf %120, %369 : vector<1x256xf32>
      %371 = arith.addf %297, %370 : vector<1x256xf32>
      %cst_74 = arith.constant 0.000000e+00 : f32
      %372 = vector.broadcast %cst_74 : f32 to vector<1x256xf32>
      %c21 = arith.constant 21 : index
      %373 = memref.load %arg2[%c21] : memref<98xf32, #tpu.memory_space<smem>>
      %374 = vector.broadcast %373 : f32 to vector<1x256xf32>
      %375 = arith.mulf %374, %44 : vector<1x256xf32>
      %c70 = arith.constant 70 : index
      %376 = memref.load %arg2[%c70] : memref<98xf32, #tpu.memory_space<smem>>
      %377 = vector.broadcast %376 : f32 to vector<1x256xf32>
      %378 = arith.mulf %377, %48 : vector<1x256xf32>
      %379 = arith.addf %375, %378 : vector<1x256xf32>
      %c3_i32_75 = arith.constant 3 : i32
      %380 = tpu.dynamic_rotate %379 by %c3_i32_75 dim 1 : vector<1x256xf32>, i32 -> vector<1x256xf32>
      %381 = arith.mulf %57, %380 : vector<1x256xf32>
      %382 = arith.addf %372, %381 : vector<1x256xf32>
      %c22 = arith.constant 22 : index
      %383 = memref.load %arg2[%c22] : memref<98xf32, #tpu.memory_space<smem>>
      %384 = vector.broadcast %383 : f32 to vector<1x256xf32>
      %385 = arith.mulf %384, %44 : vector<1x256xf32>
      %c71 = arith.constant 71 : index
      %386 = memref.load %arg2[%c71] : memref<98xf32, #tpu.memory_space<smem>>
      %387 = vector.broadcast %386 : f32 to vector<1x256xf32>
      %388 = arith.mulf %387, %48 : vector<1x256xf32>
      %389 = arith.addf %385, %388 : vector<1x256xf32>
      %c2_i32_76 = arith.constant 2 : i32
      %390 = tpu.dynamic_rotate %389 by %c2_i32_76 dim 1 : vector<1x256xf32>, i32 -> vector<1x256xf32>
      %391 = arith.mulf %64, %390 : vector<1x256xf32>
      %392 = arith.addf %382, %391 : vector<1x256xf32>
      %c23 = arith.constant 23 : index
      %393 = memref.load %arg2[%c23] : memref<98xf32, #tpu.memory_space<smem>>
      %394 = vector.broadcast %393 : f32 to vector<1x256xf32>
      %395 = arith.mulf %394, %44 : vector<1x256xf32>
      %c72 = arith.constant 72 : index
      %396 = memref.load %arg2[%c72] : memref<98xf32, #tpu.memory_space<smem>>
      %397 = vector.broadcast %396 : f32 to vector<1x256xf32>
      %398 = arith.mulf %397, %48 : vector<1x256xf32>
      %399 = arith.addf %395, %398 : vector<1x256xf32>
      %c1_i32_77 = arith.constant 1 : i32
      %400 = tpu.dynamic_rotate %399 by %c1_i32_77 dim 1 : vector<1x256xf32>, i32 -> vector<1x256xf32>
      %401 = arith.mulf %71, %400 : vector<1x256xf32>
      %402 = arith.addf %392, %401 : vector<1x256xf32>
      %c24 = arith.constant 24 : index
      %403 = memref.load %arg2[%c24] : memref<98xf32, #tpu.memory_space<smem>>
      %404 = vector.broadcast %403 : f32 to vector<1x256xf32>
      %405 = arith.mulf %404, %44 : vector<1x256xf32>
      %c73 = arith.constant 73 : index
      %406 = memref.load %arg2[%c73] : memref<98xf32, #tpu.memory_space<smem>>
      %407 = vector.broadcast %406 : f32 to vector<1x256xf32>
      %408 = arith.mulf %407, %48 : vector<1x256xf32>
      %409 = arith.addf %405, %408 : vector<1x256xf32>
      %410 = arith.mulf %78, %409 : vector<1x256xf32>
      %411 = arith.addf %402, %410 : vector<1x256xf32>
      %c25 = arith.constant 25 : index
      %412 = memref.load %arg2[%c25] : memref<98xf32, #tpu.memory_space<smem>>
      %413 = vector.broadcast %412 : f32 to vector<1x256xf32>
      %414 = arith.mulf %413, %44 : vector<1x256xf32>
      %c74 = arith.constant 74 : index
      %415 = memref.load %arg2[%c74] : memref<98xf32, #tpu.memory_space<smem>>
      %416 = vector.broadcast %415 : f32 to vector<1x256xf32>
      %417 = arith.mulf %416, %48 : vector<1x256xf32>
      %418 = arith.addf %414, %417 : vector<1x256xf32>
      %c255_i32_78 = arith.constant 255 : i32
      %419 = tpu.dynamic_rotate %418 by %c255_i32_78 dim 1 : vector<1x256xf32>, i32 -> vector<1x256xf32>
      %420 = arith.mulf %85, %419 : vector<1x256xf32>
      %421 = arith.addf %411, %420 : vector<1x256xf32>
      %c26 = arith.constant 26 : index
      %422 = memref.load %arg2[%c26] : memref<98xf32, #tpu.memory_space<smem>>
      %423 = vector.broadcast %422 : f32 to vector<1x256xf32>
      %424 = arith.mulf %423, %44 : vector<1x256xf32>
      %c75 = arith.constant 75 : index
      %425 = memref.load %arg2[%c75] : memref<98xf32, #tpu.memory_space<smem>>
      %426 = vector.broadcast %425 : f32 to vector<1x256xf32>
      %427 = arith.mulf %426, %48 : vector<1x256xf32>
      %428 = arith.addf %424, %427 : vector<1x256xf32>
      %c254_i32_79 = arith.constant 254 : i32
      %429 = tpu.dynamic_rotate %428 by %c254_i32_79 dim 1 : vector<1x256xf32>, i32 -> vector<1x256xf32>
      %430 = arith.mulf %92, %429 : vector<1x256xf32>
      %431 = arith.addf %421, %430 : vector<1x256xf32>
      %c27 = arith.constant 27 : index
      %432 = memref.load %arg2[%c27] : memref<98xf32, #tpu.memory_space<smem>>
      %433 = vector.broadcast %432 : f32 to vector<1x256xf32>
      %434 = arith.mulf %433, %44 : vector<1x256xf32>
      %c76 = arith.constant 76 : index
      %435 = memref.load %arg2[%c76] : memref<98xf32, #tpu.memory_space<smem>>
      %436 = vector.broadcast %435 : f32 to vector<1x256xf32>
      %437 = arith.mulf %436, %48 : vector<1x256xf32>
      %438 = arith.addf %434, %437 : vector<1x256xf32>
      %c253_i32_80 = arith.constant 253 : i32
      %439 = tpu.dynamic_rotate %438 by %c253_i32_80 dim 1 : vector<1x256xf32>, i32 -> vector<1x256xf32>
      %440 = arith.mulf %99, %439 : vector<1x256xf32>
      %441 = arith.addf %431, %440 : vector<1x256xf32>
      %442 = arith.mulf %127, %441 : vector<1x256xf32>
      %443 = arith.addf %371, %442 : vector<1x256xf32>
      %c240_i32 = arith.constant 240 : i32
      %444 = tpu.dynamic_rotate %44 by %c240_i32 dim 1 : vector<1x256xf32>, i32 -> vector<1x256xf32>
      %c240_i32_81 = arith.constant 240 : i32
      %445 = tpu.dynamic_rotate %48 by %c240_i32_81 dim 1 : vector<1x256xf32>, i32 -> vector<1x256xf32>
      %cst_82 = arith.constant 0.000000e+00 : f32
      %446 = vector.broadcast %cst_82 : f32 to vector<1x256xf32>
      %c28 = arith.constant 28 : index
      %447 = memref.load %arg2[%c28] : memref<98xf32, #tpu.memory_space<smem>>
      %448 = vector.broadcast %447 : f32 to vector<1x256xf32>
      %449 = arith.mulf %448, %444 : vector<1x256xf32>
      %c77 = arith.constant 77 : index
      %450 = memref.load %arg2[%c77] : memref<98xf32, #tpu.memory_space<smem>>
      %451 = vector.broadcast %450 : f32 to vector<1x256xf32>
      %452 = arith.mulf %451, %445 : vector<1x256xf32>
      %453 = arith.addf %449, %452 : vector<1x256xf32>
      %c3_i32_83 = arith.constant 3 : i32
      %454 = tpu.dynamic_rotate %453 by %c3_i32_83 dim 1 : vector<1x256xf32>, i32 -> vector<1x256xf32>
      %455 = arith.mulf %57, %454 : vector<1x256xf32>
      %456 = arith.addf %446, %455 : vector<1x256xf32>
      %c29 = arith.constant 29 : index
      %457 = memref.load %arg2[%c29] : memref<98xf32, #tpu.memory_space<smem>>
      %458 = vector.broadcast %457 : f32 to vector<1x256xf32>
      %459 = arith.mulf %458, %444 : vector<1x256xf32>
      %c78 = arith.constant 78 : index
      %460 = memref.load %arg2[%c78] : memref<98xf32, #tpu.memory_space<smem>>
      %461 = vector.broadcast %460 : f32 to vector<1x256xf32>
      %462 = arith.mulf %461, %445 : vector<1x256xf32>
      %463 = arith.addf %459, %462 : vector<1x256xf32>
      %c2_i32_84 = arith.constant 2 : i32
      %464 = tpu.dynamic_rotate %463 by %c2_i32_84 dim 1 : vector<1x256xf32>, i32 -> vector<1x256xf32>
      %465 = arith.mulf %64, %464 : vector<1x256xf32>
      %466 = arith.addf %456, %465 : vector<1x256xf32>
      %c30 = arith.constant 30 : index
      %467 = memref.load %arg2[%c30] : memref<98xf32, #tpu.memory_space<smem>>
      %468 = vector.broadcast %467 : f32 to vector<1x256xf32>
      %469 = arith.mulf %468, %444 : vector<1x256xf32>
      %c79 = arith.constant 79 : index
      %470 = memref.load %arg2[%c79] : memref<98xf32, #tpu.memory_space<smem>>
      %471 = vector.broadcast %470 : f32 to vector<1x256xf32>
      %472 = arith.mulf %471, %445 : vector<1x256xf32>
      %473 = arith.addf %469, %472 : vector<1x256xf32>
      %c1_i32_85 = arith.constant 1 : i32
      %474 = tpu.dynamic_rotate %473 by %c1_i32_85 dim 1 : vector<1x256xf32>, i32 -> vector<1x256xf32>
      %475 = arith.mulf %71, %474 : vector<1x256xf32>
      %476 = arith.addf %466, %475 : vector<1x256xf32>
      %c31 = arith.constant 31 : index
      %477 = memref.load %arg2[%c31] : memref<98xf32, #tpu.memory_space<smem>>
      %478 = vector.broadcast %477 : f32 to vector<1x256xf32>
      %479 = arith.mulf %478, %444 : vector<1x256xf32>
      %c80 = arith.constant 80 : index
      %480 = memref.load %arg2[%c80] : memref<98xf32, #tpu.memory_space<smem>>
      %481 = vector.broadcast %480 : f32 to vector<1x256xf32>
      %482 = arith.mulf %481, %445 : vector<1x256xf32>
      %483 = arith.addf %479, %482 : vector<1x256xf32>
      %484 = arith.mulf %78, %483 : vector<1x256xf32>
      %485 = arith.addf %476, %484 : vector<1x256xf32>
      %c32 = arith.constant 32 : index
      %486 = memref.load %arg2[%c32] : memref<98xf32, #tpu.memory_space<smem>>
      %487 = vector.broadcast %486 : f32 to vector<1x256xf32>
      %488 = arith.mulf %487, %444 : vector<1x256xf32>
      %c81 = arith.constant 81 : index
      %489 = memref.load %arg2[%c81] : memref<98xf32, #tpu.memory_space<smem>>
      %490 = vector.broadcast %489 : f32 to vector<1x256xf32>
      %491 = arith.mulf %490, %445 : vector<1x256xf32>
      %492 = arith.addf %488, %491 : vector<1x256xf32>
      %c255_i32_86 = arith.constant 255 : i32
      %493 = tpu.dynamic_rotate %492 by %c255_i32_86 dim 1 : vector<1x256xf32>, i32 -> vector<1x256xf32>
      %494 = arith.mulf %85, %493 : vector<1x256xf32>
      %495 = arith.addf %485, %494 : vector<1x256xf32>
      %c33 = arith.constant 33 : index
      %496 = memref.load %arg2[%c33] : memref<98xf32, #tpu.memory_space<smem>>
      %497 = vector.broadcast %496 : f32 to vector<1x256xf32>
      %498 = arith.mulf %497, %444 : vector<1x256xf32>
      %c82 = arith.constant 82 : index
      %499 = memref.load %arg2[%c82] : memref<98xf32, #tpu.memory_space<smem>>
      %500 = vector.broadcast %499 : f32 to vector<1x256xf32>
      %501 = arith.mulf %500, %445 : vector<1x256xf32>
      %502 = arith.addf %498, %501 : vector<1x256xf32>
      %c254_i32_87 = arith.constant 254 : i32
      %503 = tpu.dynamic_rotate %502 by %c254_i32_87 dim 1 : vector<1x256xf32>, i32 -> vector<1x256xf32>
      %504 = arith.mulf %92, %503 : vector<1x256xf32>
      %505 = arith.addf %495, %504 : vector<1x256xf32>
      %c34 = arith.constant 34 : index
      %506 = memref.load %arg2[%c34] : memref<98xf32, #tpu.memory_space<smem>>
      %507 = vector.broadcast %506 : f32 to vector<1x256xf32>
      %508 = arith.mulf %507, %444 : vector<1x256xf32>
      %c83 = arith.constant 83 : index
      %509 = memref.load %arg2[%c83] : memref<98xf32, #tpu.memory_space<smem>>
      %510 = vector.broadcast %509 : f32 to vector<1x256xf32>
      %511 = arith.mulf %510, %445 : vector<1x256xf32>
      %512 = arith.addf %508, %511 : vector<1x256xf32>
      %c253_i32_88 = arith.constant 253 : i32
      %513 = tpu.dynamic_rotate %512 by %c253_i32_88 dim 1 : vector<1x256xf32>, i32 -> vector<1x256xf32>
      %514 = arith.mulf %99, %513 : vector<1x256xf32>
      %515 = arith.addf %505, %514 : vector<1x256xf32>
      %516 = arith.mulf %134, %515 : vector<1x256xf32>
      %517 = arith.addf %443, %516 : vector<1x256xf32>
      %c224_i32 = arith.constant 224 : i32
      %518 = tpu.dynamic_rotate %44 by %c224_i32 dim 1 : vector<1x256xf32>, i32 -> vector<1x256xf32>
      %c224_i32_89 = arith.constant 224 : i32
      %519 = tpu.dynamic_rotate %48 by %c224_i32_89 dim 1 : vector<1x256xf32>, i32 -> vector<1x256xf32>
      %cst_90 = arith.constant 0.000000e+00 : f32
      %520 = vector.broadcast %cst_90 : f32 to vector<1x256xf32>
      %c35 = arith.constant 35 : index
      %521 = memref.load %arg2[%c35] : memref<98xf32, #tpu.memory_space<smem>>
      %522 = vector.broadcast %521 : f32 to vector<1x256xf32>
      %523 = arith.mulf %522, %518 : vector<1x256xf32>
      %c84 = arith.constant 84 : index
      %524 = memref.load %arg2[%c84] : memref<98xf32, #tpu.memory_space<smem>>
      %525 = vector.broadcast %524 : f32 to vector<1x256xf32>
      %526 = arith.mulf %525, %519 : vector<1x256xf32>
      %527 = arith.addf %523, %526 : vector<1x256xf32>
      %c3_i32_91 = arith.constant 3 : i32
      %528 = tpu.dynamic_rotate %527 by %c3_i32_91 dim 1 : vector<1x256xf32>, i32 -> vector<1x256xf32>
      %529 = arith.mulf %57, %528 : vector<1x256xf32>
      %530 = arith.addf %520, %529 : vector<1x256xf32>
      %c36 = arith.constant 36 : index
      %531 = memref.load %arg2[%c36] : memref<98xf32, #tpu.memory_space<smem>>
      %532 = vector.broadcast %531 : f32 to vector<1x256xf32>
      %533 = arith.mulf %532, %518 : vector<1x256xf32>
      %c85 = arith.constant 85 : index
      %534 = memref.load %arg2[%c85] : memref<98xf32, #tpu.memory_space<smem>>
      %535 = vector.broadcast %534 : f32 to vector<1x256xf32>
      %536 = arith.mulf %535, %519 : vector<1x256xf32>
      %537 = arith.addf %533, %536 : vector<1x256xf32>
      %c2_i32_92 = arith.constant 2 : i32
      %538 = tpu.dynamic_rotate %537 by %c2_i32_92 dim 1 : vector<1x256xf32>, i32 -> vector<1x256xf32>
      %539 = arith.mulf %64, %538 : vector<1x256xf32>
      %540 = arith.addf %530, %539 : vector<1x256xf32>
      %c37 = arith.constant 37 : index
      %541 = memref.load %arg2[%c37] : memref<98xf32, #tpu.memory_space<smem>>
      %542 = vector.broadcast %541 : f32 to vector<1x256xf32>
      %543 = arith.mulf %542, %518 : vector<1x256xf32>
      %c86 = arith.constant 86 : index
      %544 = memref.load %arg2[%c86] : memref<98xf32, #tpu.memory_space<smem>>
      %545 = vector.broadcast %544 : f32 to vector<1x256xf32>
      %546 = arith.mulf %545, %519 : vector<1x256xf32>
      %547 = arith.addf %543, %546 : vector<1x256xf32>
      %c1_i32_93 = arith.constant 1 : i32
      %548 = tpu.dynamic_rotate %547 by %c1_i32_93 dim 1 : vector<1x256xf32>, i32 -> vector<1x256xf32>
      %549 = arith.mulf %71, %548 : vector<1x256xf32>
      %550 = arith.addf %540, %549 : vector<1x256xf32>
      %c38 = arith.constant 38 : index
      %551 = memref.load %arg2[%c38] : memref<98xf32, #tpu.memory_space<smem>>
      %552 = vector.broadcast %551 : f32 to vector<1x256xf32>
      %553 = arith.mulf %552, %518 : vector<1x256xf32>
      %c87 = arith.constant 87 : index
      %554 = memref.load %arg2[%c87] : memref<98xf32, #tpu.memory_space<smem>>
      %555 = vector.broadcast %554 : f32 to vector<1x256xf32>
      %556 = arith.mulf %555, %519 : vector<1x256xf32>
      %557 = arith.addf %553, %556 : vector<1x256xf32>
      %558 = arith.mulf %78, %557 : vector<1x256xf32>
      %559 = arith.addf %550, %558 : vector<1x256xf32>
      %c39 = arith.constant 39 : index
      %560 = memref.load %arg2[%c39] : memref<98xf32, #tpu.memory_space<smem>>
      %561 = vector.broadcast %560 : f32 to vector<1x256xf32>
      %562 = arith.mulf %561, %518 : vector<1x256xf32>
      %c88 = arith.constant 88 : index
      %563 = memref.load %arg2[%c88] : memref<98xf32, #tpu.memory_space<smem>>
      %564 = vector.broadcast %563 : f32 to vector<1x256xf32>
      %565 = arith.mulf %564, %519 : vector<1x256xf32>
      %566 = arith.addf %562, %565 : vector<1x256xf32>
      %c255_i32_94 = arith.constant 255 : i32
      %567 = tpu.dynamic_rotate %566 by %c255_i32_94 dim 1 : vector<1x256xf32>, i32 -> vector<1x256xf32>
      %568 = arith.mulf %85, %567 : vector<1x256xf32>
      %569 = arith.addf %559, %568 : vector<1x256xf32>
      %c40 = arith.constant 40 : index
      %570 = memref.load %arg2[%c40] : memref<98xf32, #tpu.memory_space<smem>>
      %571 = vector.broadcast %570 : f32 to vector<1x256xf32>
      %572 = arith.mulf %571, %518 : vector<1x256xf32>
      %c89 = arith.constant 89 : index
      %573 = memref.load %arg2[%c89] : memref<98xf32, #tpu.memory_space<smem>>
      %574 = vector.broadcast %573 : f32 to vector<1x256xf32>
      %575 = arith.mulf %574, %519 : vector<1x256xf32>
      %576 = arith.addf %572, %575 : vector<1x256xf32>
      %c254_i32_95 = arith.constant 254 : i32
      %577 = tpu.dynamic_rotate %576 by %c254_i32_95 dim 1 : vector<1x256xf32>, i32 -> vector<1x256xf32>
      %578 = arith.mulf %92, %577 : vector<1x256xf32>
      %579 = arith.addf %569, %578 : vector<1x256xf32>
      %c41 = arith.constant 41 : index
      %580 = memref.load %arg2[%c41] : memref<98xf32, #tpu.memory_space<smem>>
      %581 = vector.broadcast %580 : f32 to vector<1x256xf32>
      %582 = arith.mulf %581, %518 : vector<1x256xf32>
      %c90 = arith.constant 90 : index
      %583 = memref.load %arg2[%c90] : memref<98xf32, #tpu.memory_space<smem>>
      %584 = vector.broadcast %583 : f32 to vector<1x256xf32>
      %585 = arith.mulf %584, %519 : vector<1x256xf32>
      %586 = arith.addf %582, %585 : vector<1x256xf32>
      %c253_i32_96 = arith.constant 253 : i32
      %587 = tpu.dynamic_rotate %586 by %c253_i32_96 dim 1 : vector<1x256xf32>, i32 -> vector<1x256xf32>
      %588 = arith.mulf %99, %587 : vector<1x256xf32>
      %589 = arith.addf %579, %588 : vector<1x256xf32>
      %590 = arith.mulf %141, %589 : vector<1x256xf32>
      %591 = arith.addf %517, %590 : vector<1x256xf32>
      %c208_i32 = arith.constant 208 : i32
      %592 = tpu.dynamic_rotate %44 by %c208_i32 dim 1 : vector<1x256xf32>, i32 -> vector<1x256xf32>
      %c208_i32_97 = arith.constant 208 : i32
      %593 = tpu.dynamic_rotate %48 by %c208_i32_97 dim 1 : vector<1x256xf32>, i32 -> vector<1x256xf32>
      %cst_98 = arith.constant 0.000000e+00 : f32
      %594 = vector.broadcast %cst_98 : f32 to vector<1x256xf32>
      %c42 = arith.constant 42 : index
      %595 = memref.load %arg2[%c42] : memref<98xf32, #tpu.memory_space<smem>>
      %596 = vector.broadcast %595 : f32 to vector<1x256xf32>
      %597 = arith.mulf %596, %592 : vector<1x256xf32>
      %c91 = arith.constant 91 : index
      %598 = memref.load %arg2[%c91] : memref<98xf32, #tpu.memory_space<smem>>
      %599 = vector.broadcast %598 : f32 to vector<1x256xf32>
      %600 = arith.mulf %599, %593 : vector<1x256xf32>
      %601 = arith.addf %597, %600 : vector<1x256xf32>
      %c3_i32_99 = arith.constant 3 : i32
      %602 = tpu.dynamic_rotate %601 by %c3_i32_99 dim 1 : vector<1x256xf32>, i32 -> vector<1x256xf32>
      %603 = arith.mulf %57, %602 : vector<1x256xf32>
      %604 = arith.addf %594, %603 : vector<1x256xf32>
      %c43 = arith.constant 43 : index
      %605 = memref.load %arg2[%c43] : memref<98xf32, #tpu.memory_space<smem>>
      %606 = vector.broadcast %605 : f32 to vector<1x256xf32>
      %607 = arith.mulf %606, %592 : vector<1x256xf32>
      %c92 = arith.constant 92 : index
      %608 = memref.load %arg2[%c92] : memref<98xf32, #tpu.memory_space<smem>>
      %609 = vector.broadcast %608 : f32 to vector<1x256xf32>
      %610 = arith.mulf %609, %593 : vector<1x256xf32>
      %611 = arith.addf %607, %610 : vector<1x256xf32>
      %c2_i32_100 = arith.constant 2 : i32
      %612 = tpu.dynamic_rotate %611 by %c2_i32_100 dim 1 : vector<1x256xf32>, i32 -> vector<1x256xf32>
      %613 = arith.mulf %64, %612 : vector<1x256xf32>
      %614 = arith.addf %604, %613 : vector<1x256xf32>
      %c44 = arith.constant 44 : index
      %615 = memref.load %arg2[%c44] : memref<98xf32, #tpu.memory_space<smem>>
      %616 = vector.broadcast %615 : f32 to vector<1x256xf32>
      %617 = arith.mulf %616, %592 : vector<1x256xf32>
      %c93 = arith.constant 93 : index
      %618 = memref.load %arg2[%c93] : memref<98xf32, #tpu.memory_space<smem>>
      %619 = vector.broadcast %618 : f32 to vector<1x256xf32>
      %620 = arith.mulf %619, %593 : vector<1x256xf32>
      %621 = arith.addf %617, %620 : vector<1x256xf32>
      %c1_i32_101 = arith.constant 1 : i32
      %622 = tpu.dynamic_rotate %621 by %c1_i32_101 dim 1 : vector<1x256xf32>, i32 -> vector<1x256xf32>
      %623 = arith.mulf %71, %622 : vector<1x256xf32>
      %624 = arith.addf %614, %623 : vector<1x256xf32>
      %c45 = arith.constant 45 : index
      %625 = memref.load %arg2[%c45] : memref<98xf32, #tpu.memory_space<smem>>
      %626 = vector.broadcast %625 : f32 to vector<1x256xf32>
      %627 = arith.mulf %626, %592 : vector<1x256xf32>
      %c94 = arith.constant 94 : index
      %628 = memref.load %arg2[%c94] : memref<98xf32, #tpu.memory_space<smem>>
      %629 = vector.broadcast %628 : f32 to vector<1x256xf32>
      %630 = arith.mulf %629, %593 : vector<1x256xf32>
      %631 = arith.addf %627, %630 : vector<1x256xf32>
      %632 = arith.mulf %78, %631 : vector<1x256xf32>
      %633 = arith.addf %624, %632 : vector<1x256xf32>
      %c46 = arith.constant 46 : index
      %634 = memref.load %arg2[%c46] : memref<98xf32, #tpu.memory_space<smem>>
      %635 = vector.broadcast %634 : f32 to vector<1x256xf32>
      %636 = arith.mulf %635, %592 : vector<1x256xf32>
      %c95 = arith.constant 95 : index
      %637 = memref.load %arg2[%c95] : memref<98xf32, #tpu.memory_space<smem>>
      %638 = vector.broadcast %637 : f32 to vector<1x256xf32>
      %639 = arith.mulf %638, %593 : vector<1x256xf32>
      %640 = arith.addf %636, %639 : vector<1x256xf32>
      %c255_i32_102 = arith.constant 255 : i32
      %641 = tpu.dynamic_rotate %640 by %c255_i32_102 dim 1 : vector<1x256xf32>, i32 -> vector<1x256xf32>
      %642 = arith.mulf %85, %641 : vector<1x256xf32>
      %643 = arith.addf %633, %642 : vector<1x256xf32>
      %c47 = arith.constant 47 : index
      %644 = memref.load %arg2[%c47] : memref<98xf32, #tpu.memory_space<smem>>
      %645 = vector.broadcast %644 : f32 to vector<1x256xf32>
      %646 = arith.mulf %645, %592 : vector<1x256xf32>
      %c96 = arith.constant 96 : index
      %647 = memref.load %arg2[%c96] : memref<98xf32, #tpu.memory_space<smem>>
      %648 = vector.broadcast %647 : f32 to vector<1x256xf32>
      %649 = arith.mulf %648, %593 : vector<1x256xf32>
      %650 = arith.addf %646, %649 : vector<1x256xf32>
      %c254_i32_103 = arith.constant 254 : i32
      %651 = tpu.dynamic_rotate %650 by %c254_i32_103 dim 1 : vector<1x256xf32>, i32 -> vector<1x256xf32>
      %652 = arith.mulf %92, %651 : vector<1x256xf32>
      %653 = arith.addf %643, %652 : vector<1x256xf32>
      %c48 = arith.constant 48 : index
      %654 = memref.load %arg2[%c48] : memref<98xf32, #tpu.memory_space<smem>>
      %655 = vector.broadcast %654 : f32 to vector<1x256xf32>
      %656 = arith.mulf %655, %592 : vector<1x256xf32>
      %c97 = arith.constant 97 : index
      %657 = memref.load %arg2[%c97] : memref<98xf32, #tpu.memory_space<smem>>
      %658 = vector.broadcast %657 : f32 to vector<1x256xf32>
      %659 = arith.mulf %658, %593 : vector<1x256xf32>
      %660 = arith.addf %656, %659 : vector<1x256xf32>
      %c253_i32_104 = arith.constant 253 : i32
      %661 = tpu.dynamic_rotate %660 by %c253_i32_104 dim 1 : vector<1x256xf32>, i32 -> vector<1x256xf32>
      %662 = arith.mulf %99, %661 : vector<1x256xf32>
      %663 = arith.addf %653, %662 : vector<1x256xf32>
      %664 = arith.mulf %148, %663 : vector<1x256xf32>
      %665 = arith.addf %591, %664 : vector<1x256xf32>
      %666 = arith.negf %665 : vector<1x256xf32>
      %667 = math.exp %666 : vector<1x256xf32>
      %cst_105 = arith.constant 1.000000e+00 : f32
      %668 = vector.broadcast %cst_105 : f32 to vector<1x256xf32>
      %669 = arith.addf %668, %667 : vector<1x256xf32>
      %670 = arith.divf %668, %669 : vector<1x256xf32>
      %c0_106 = arith.constant 0 : index
      %c0_107 = arith.constant 0 : index
      %c0_108 = arith.constant 0 : index
      %671 = vector.load %arg5[%c0_106, %c0_107, %c0_108] : memref<1x1x256xf32, #tpu.memory_space<vmem>>, vector<1x1x256xf32>
      %672 = vector.shape_cast %671 : vector<1x1x256xf32> to vector<1x256xf32>
      %673 = vector.shape_cast %670 : vector<1x256xf32> to vector<1x1x256xf32>
      tpu.vector_store %arg5[%c0_106, %c0_107, %c0_108], %673 {strides = array<i32>} : memref<1x1x256xf32, #tpu.memory_space<vmem>>, vector<1x1x256xf32>,
    } else {
    }
    return
  }
  func.func @transform_0(%arg0: i32, %arg1: i32) -> i32 {
    %c0_i32 = arith.constant 0 : i32
    %c0_i32_0 = arith.constant 0 : i32
    return %c0_i32 : i32
  }
  func.func @transform_1(%arg0: i32, %arg1: i32) -> (i32, i32) {
    %c0_i32 = arith.constant 0 : i32
    %c0_i32_0 = arith.constant 0 : i32
    %c0_i32_1 = arith.constant 0 : i32
    return %c0_i32, %c0_i32_0 : i32, i32
  }
  func.func @transform_2(%arg0: i32, %arg1: i32) -> (i32, i32, i32) {
    %c0_i32 = arith.constant 0 : i32
    %c0_i32_0 = arith.constant 0 : i32
    return %arg0, %arg1, %c0_i32 : i32, i32, i32
  }
  func.func @transform_3(%arg0: i32, %arg1: i32) -> (i32, i32, i32) {
    %c0_i32 = arith.constant 0 : i32
    %c0_i32_0 = arith.constant 0 : i32
    %c0_i32_1 = arith.constant 0 : i32
    return %arg0, %c0_i32, %c0_i32_0 : i32, i32, i32
  }
}

</mosaic_0001>

<llo_original>
// kernel: tpu_custom_call.1
$region0: #{tpu_custom_call.1}
  #allocation0 [shape = 'u32[]', space=smem, size = 0x4, offset = 0x4, fixed_abs, tag = 'smem constant byte address 0x4 - core index']
  #allocation1 [shape = 'u32[144,128]{1,0:T(1,128)}', space=vmem, size = 0x12000, scoped, tag = 'internal scratch']
  #allocation2 [shape = 'f32[1,8,256]{2,1,0:T(8,128)}', space=vmem, size = 0x2000, scoped, tag = 'scratch operand']
  #allocation3 [shape = 'f32[1,8,256]{2,1,0:T(8,128)}', space=vmem, size = 0x2000, scoped, tag = 'scratch operand']
  %s0 = inlined_call_operand.hbm [shape: f32[98], index: 0, kind: input, shape index: {}]
  %s1 = inlined_call_operand.hbm [shape: s32[2,256], index: 1, kind: input, shape index: {}]
  %s2 = inlined_call_operand.hbm [shape: f32[2,8,256], index: 2, kind: input, shape index: {}]
  %s3 = inlined_call_operand.hbm [shape: f32[2,1,256], index: 3, kind: output, shape index: {}]
  %s4 = sld [smem:[#allocation0]]
  $region65: #{tpu_custom_call.1} parent=0
    _
  %s6 = ssub.s32 1, %s4
  %s7 = scalar_select 0, %s6, %s4
  $region1: #{tpu_custom_call.1} parent=0
    #allocation4 [shape = 'u8[512]{0}', space=smem, size = 0x200, scoped, tag = 'input window, operand 0, single buffered']
    #allocation5 [shape = 's32[2]{0}', space=sflag, size = 0x8, scoped, tag = 'scoped memory for tpu_custom_call.1']
    #allocation6 [shape = 's32[2]{0}', space=sflag, size = 0x8, scoped, tag = 'scoped memory for tpu_custom_call.1']
    #allocation7 [shape = 's32[2]{0}', space=sflag, size = 0x8, scoped, tag = 'scoped memory for tpu_custom_call.1']
    #allocation8 [shape = 'u8[2048]{0}', space=vmem, size = 0x800, scoped, tag = 'input window, operand 1, single buffered']
    #allocation9 [shape = 'u8[16384]{0}', space=vmem, size = 0x4000, scoped, tag = 'input window, operand 2']
    #allocation10 [shape = 's32[2]{0}', space=sflag, size = 0x8, scoped, tag = 'scoped memory for tpu_custom_call.1']
    #allocation11 [shape = 'u8[2048]{0}', space=vmem, size = 0x800, scoped, tag = 'output window, operand 0']
    %8 = vsyncpa [#allocation7], 0
    %9 = vsyncpa [#allocation5], 0
    %10 = vsyncpa [#allocation10], 0
    %s11 = scalar_lea.sflag [#allocation10], 1
    %12 = vsyncpa %s11, 0
    %13 = vsyncpa [#allocation6], 0
    %s14 = scalar_lea.sflag [#allocation6], 1
    %15 = vsyncpa %s14, 0
    loop: start=0, step=1, limit=4
    $region2: #{tpu_custom_call.1} parent=1 // loop_pre_header
      _
    $region3: #{tpu_custom_call.1} parent=1 // loop_header
      %s17 = sphi 0, %s21
      %p18 = scmp.ge.s32.totalorder %s17, 4
      %s24 = sphi 0, %s36
      %s25 = sphi 0, %s32
      %s26 = sphi 0, %s24
      %s27 = sphi 0, %s25
      %s28 = sphi 0, %s26
      %s29 = sphi 0, %s27
      %s37 = sphi 0, %s37
      %s39 = sphi 0, %s37
      %s40 = sphi 0, %s39
      %s54 = sphi 0, %s40
      %s58 = sphi 0, %s58
      %s60 = sphi 0, %s58
      %s61 = sphi 0, %s60
      %s75 = sphi 0, %s61
      %s83 = sphi 0, %s85
      %s86 = sphi 0, %s83
      %s87 = sphi 0, %s86
      %s103 = sphi 0, %s87
      %s109 = sphi 0, %s111
      %s112 = sphi 0, %s109
      %s113 = sphi 0, %s112
      %s129 = sphi 0, %s113
    $region4: #{tpu_custom_call.1} parent=1 // loop_header_branch
      %20 = sbr.rel (%p18) target = $region8
    $region5: #{tpu_custom_call.1} parent=1 // loop_body
      %s22 = ssub.s32 %s17, 1
      %s23 = ssub.s32 %s17, 2
      %s30 = sadd.s32 1, %s25
      %p31 = scmp.ge.s32.totalorder %s30, 1
      %s32 = scalar_select %p31, 0, %s30
      %s33 = sadd.s32 1, %s24
      %s34 = scalar_select %p31, %s33, %s24
      %p35 = scmp.ge.s32.totalorder %s34, 2
      %s36 = scalar_select %p35, 0, %s34
      %s38 = sadd.s32 %s37, 1
      %p41 = scmp.eq.s32.totalorder %s17, 1
      %p42 = scmp.ne.s32.totalorder %s37, %s39
      %p43 = scmp.eq.s32.totalorder %s17, 0
      %p44 = por %p42, %p43
      %p45 = scmp.ne.s32.totalorder %s37, %s39
      %p46 = scmp.eq.s32.totalorder %s22, 1
      %p47 = por %p45, %p46
      %p48 = scmp.ne.s32.totalorder %s39, %s40
      %p49 = scmp.eq.s32.totalorder %s22, 0
      %p50 = por %p48, %p49
      %p51 = scmp.ne.s32.totalorder %s39, %s40
      %p52 = scmp.eq.s32.totalorder %s23, 1
      %p53 = por %p51, %p52
      %p55 = scmp.ne.s32.totalorder %s40, %s54
      %p56 = scmp.eq.s32.totalorder %s23, 0
      %p57 = por %p55, %p56
      %s59 = sadd.s32 %s58, 1
      %p62 = scmp.eq.s32.totalorder %s17, 1
      %p63 = scmp.ne.s32.totalorder %s58, %s60
      %p64 = scmp.eq.s32.totalorder %s17, 0
      %p65 = por %p63, %p64
      %p66 = scmp.ne.s32.totalorder %s58, %s60
      %p67 = scmp.eq.s32.totalorder %s22, 1
      %p68 = por %p66, %p67
      %p69 = scmp.ne.s32.totalorder %s60, %s61
      %p70 = scmp.eq.s32.totalorder %s22, 0
      %p71 = por %p69, %p70
      %p72 = scmp.ne.s32.totalorder %s60, %s61
      %p73 = scmp.eq.s32.totalorder %s23, 1
      %p74 = por %p72, %p73
      %p76 = scmp.ne.s32.totalorder %s61, %s75
      %p77 = scmp.eq.s32.totalorder %s23, 0
      %p78 = por %p76, %p77
      %s79 = ssub.s32 %s24, %s36
      %s80 = ssub.s32 %s25, %s32
      %s81 = sor.u32 %s79, %s80
      %p82 = scmp.eq.s32.totalorder %s81, 0
      %s84 = sadd.s32 %s83, 1
      %s85 = scalar_select %p82, %s83, %s84
      %p88 = pneg %p82
      %p89 = scmp.eq.s32.totalorder %s17, 1
      %p90 = por %p88, %p89
      %p91 = scmp.ne.s32.totalorder %s83, %s86
      %p92 = scmp.eq.s32.totalorder %s17, 0
      %p93 = por %p91, %p92
      %p94 = scmp.ne.s32.totalorder %s83, %s86
      %p95 = scmp.eq.s32.totalorder %s22, 1
      %p96 = por %p94, %p95
      %p97 = scmp.ne.s32.totalorder %s86, %s87
      %p98 = scmp.eq.s32.totalorder %s22, 0
      %p99 = por %p97, %p98
      %p100 = scmp.ne.s32.totalorder %s86, %s87
      %p101 = scmp.eq.s32.totalorder %s23, 1
      %p102 = por %p100, %p101
      %p104 = scmp.ne.s32.totalorder %s87, %s103
      %p105 = scmp.eq.s32.totalorder %s23, 0
      %p106 = por %p104, %p105
      %s107 = ssub.s32 %s24, %s36
      %p108 = scmp.eq.s32.totalorder %s107, 0
      %s110 = sadd.s32 %s109, 1
      %s111 = scalar_select %p108, %s109, %s110
      %p114 = pneg %p108
      %p115 = scmp.eq.s32.totalorder %s17, 1
      %p116 = por %p114, %p115
      %p117 = scmp.ne.s32.totalorder %s109, %s112
      %p118 = scmp.eq.s32.totalorder %s17, 0
      %p119 = por %p117, %p118
      %p120 = scmp.ne.s32.totalorder %s109, %s112
      %p121 = scmp.eq.s32.totalorder %s22, 1
      %p122 = por %p120, %p121
      %p123 = scmp.ne.s32.totalorder %s112, %s113
      %p124 = scmp.eq.s32.totalorder %s22, 0
      %p125 = por %p123, %p124
      %p126 = scmp.ne.s32.totalorder %s112, %s113
      %p127 = scmp.eq.s32.totalorder %s23, 1
      %p128 = por %p126, %p127
      %p130 = scmp.ne.s32.totalorder %s113, %s129
      %p131 = scmp.eq.s32.totalorder %s23, 0
      %p132 = por %p130, %p131
      %p133 = scmp.le.s32.totalorder 1, %s17
      %p134 = scmp.lt.s32.totalorder %s17, 3
      %p135 = pnand %p133, %p134
      %p136 = pneg %p135
      // Predicated region
      $region9: #{tpu_custom_call.1} parent=5 // pred_check
        _
      $region10: #{tpu_custom_call.1} parent=5 // pred_check_branch
        %138 = sbr.rel (%p135) target = $region12
      $region11: #{tpu_custom_call.1} parent=5 // pred_region
        %s139 = ssub.s32 %s17, 1
        // Predicated region
        $region13: #{tpu_custom_call.1} parent=11 // pred_check
          %p140 = pneg %p50
        $region14: #{tpu_custom_call.1} parent=11 // pred_check_branch
          %142 = sbr.rel (%p140) target = $region16
        $region15: #{tpu_custom_call.1} parent=11 // pred_region
          %s144 = ssub.s32 16, 16
          %145 = vsyncadd [#allocation7], %s144
          %148 = dma.hbm_to_smem %s0, 16, [#allocation4], [#allocation7]
        $region16: #{tpu_custom_call.1} parent=11 // pred_fallthru
          _
        // Predicated region
        $region17: #{tpu_custom_call.1} parent=11 // pred_check
          %p149 = pneg %p71
        $region18: #{tpu_custom_call.1} parent=11 // pred_check_branch
          %151 = sbr.rel (%p149) target = $region20
        $region19: #{tpu_custom_call.1} parent=11 // pred_region
          %s153 = ssub.s32 64, 64
          %154 = vsyncadd [#allocation5], %s153
          %s156 = sshll.u32 [#allocation8], 4
          %s157 = int_to_ptr.vmem [resolvable:$true] %s156
          %159 = dma.hbm_to_vmem [thread:$0]  %s1, 64, %s157, [#allocation5]
        $region20: #{tpu_custom_call.1} parent=11 // pred_fallthru
          _
      $region12: #{tpu_custom_call.1} parent=5 // pred_fallthru
        _
      %p160 = scmp.lt.s32.totalorder %s17, 2
      // Predicated region
      $region21: #{tpu_custom_call.1} parent=5 // pred_check
        %p161 = pneg %p160
      $region22: #{tpu_custom_call.1} parent=5 // pred_check_branch
        %163 = sbr.rel (%p161) target = $region24
      $region23: #{tpu_custom_call.1} parent=5 // pred_region
        // Predicated region
        $region25: #{tpu_custom_call.1} parent=23 // pred_check
          %p164 = pneg %p93
        $region26: #{tpu_custom_call.1} parent=23 // pred_check_branch
          %166 = sbr.rel (%p164) target = $region28
        $region27: #{tpu_custom_call.1} parent=23 // pred_region
          %s167 = sand.u32 %s83, 1
          %s168 = scalar_lea.sflag [#allocation10], %s167
          %s169 = sand.u32 %s83, 1
          %s170 = smul.addr %s169, 16
          %s171 = scalar_lea.vmem [#allocation9], %s170
          %s173 = ssub.s32 256, 256
          %174 = vsyncadd %s168, %s173
          %s175 = smul.addr %s25, 2
          %s176 = smul.addr %s24, 2
          %s177 = sadd.s32 %s175, %s176
          %s178 = smul.addr %s177, 128
          %s179 = scalar_lea.hbm %s2, %s178
          %s181 = sshll.u32 %s171, 4
          %s182 = int_to_ptr.vmem [resolvable:$true] %s181
          %184 = dma.hbm_to_vmem [thread:$0]  %s179, 256, %s182, %s168
        $region28: #{tpu_custom_call.1} parent=23 // pred_fallthru
          _
      $region24: #{tpu_custom_call.1} parent=5 // pred_fallthru
        _
      %p185 = scmp.le.s32.totalorder 1, %s17
      %p186 = scmp.lt.s32.totalorder %s17, 3
      %p187 = pnand %p185, %p186
      %p188 = pneg %p187
      // Predicated region
      $region29: #{tpu_custom_call.1} parent=5 // pred_check
        _
      $region30: #{tpu_custom_call.1} parent=5 // pred_check_branch
        %190 = sbr.rel (%p187) target = $region32
      $region31: #{tpu_custom_call.1} parent=5 // pred_region
        %s191 = ssub.s32 %s17, 1
        // Predicated region
        $region33: #{tpu_custom_call.1} parent=31 // pred_check
          %p192 = pneg %p50
        $region34: #{tpu_custom_call.1} parent=31 // pred_check_branch
          %194 = sbr.rel (%p192) target = $region36
        $region35: #{tpu_custom_call.1} parent=31 // pred_region
          %195 = dma.done [#allocation7], 16
        $region36: #{tpu_custom_call.1} parent=31 // pred_fallthru
          _
        // Predicated region
        $region37: #{tpu_custom_call.1} parent=31 // pred_check
          %p196 = pneg %p71
        $region38: #{tpu_custom_call.1} parent=31 // pred_check_branch
          %198 = sbr.rel (%p196) target = $region40
        $region39: #{tpu_custom_call.1} parent=31 // pred_region
          %199 = dma.done [#allocation5], 64
        $region40: #{tpu_custom_call.1} parent=31 // pred_fallthru
          _
        %s200 = sand.u32 %s86, 1
        %s201 = scalar_lea.sflag [#allocation10], %s200
        %s202 = sand.u32 %s86, 1
        %s203 = smul.addr %s202, 16
        %s204 = scalar_lea.vmem [#allocation9], %s203
        // Predicated region
        $region41: #{tpu_custom_call.1} parent=31 // pred_check
          %p205 = pneg %p99
        $region42: #{tpu_custom_call.1} parent=31 // pred_check_branch
          %207 = sbr.rel (%p205) target = $region44
        $region43: #{tpu_custom_call.1} parent=31 // pred_region
          %208 = dma.done %s201, 256
        $region44: #{tpu_custom_call.1} parent=31 // pred_fallthru
          _
        %209 = sfence
        %p210 = pneg %p50
        %p211 = pneg %p47
        %p212 = pneg %p71
        %p213 = pneg %p68
        %s214 = sand.u32 %s86, 1
        %s215 = scalar_lea.sflag [#allocation10], %s214
        %s216 = sand.u32 %s86, 1
        %s217 = smul.addr %s216, 16
        %s218 = scalar_lea.vmem [#allocation9], %s217
        %p219 = pneg %p99
        %p220 = pneg %p96
        %p221 = pneg %p125
        %p222 = pneg %p122
        %s223 = sand.u32 %s112, 1
        %s224 = scalar_lea.sflag [#allocation6], %s223
        %s225 = sand.u32 %s112, 1
        %s226 = smul.addr %s225, 2
        %s227 = scalar_lea.vmem [#allocation11], %s226
        %p228 = scmp.eq.s32.totalorder %s27, 0
        // Predicated region
        $region45: #{tpu_custom_call.1} parent=31 // pred_check
          %p229 = pneg %p228
        $region46: #{tpu_custom_call.1} parent=31 // pred_check_branch
          %231 = sbr.rel (%p229) target = $region48
        $region47: #{tpu_custom_call.1} parent=31 // pred_region
          %232 = vst [vmem:[#allocation2] sm:$0xff] 0.0
          %233 = vst [vmem:[#allocation2 + $0x8] sm:$0xff] 0.0
          %234 = vst [vmem:[#allocation3] sm:$0xff] -inf
          %235 = vst [vmem:[#allocation3 + $0x8] sm:$0xff] -inf
        $region48: #{tpu_custom_call.1} parent=31 // pred_fallthru
          _
        %s236 = smul.u32 0, 2
        %s237 = smul.addr %s236, 8
        %s238 = scalar_lea.vmem %s204, %s237 [#allocation9]
        %v239 = vld [vmem:[%s238] sm:$0xff]
        %v240 = vld [vmem:[%s238 + $0x8] sm:$0xff]
        %s241 = smul.u32 %s27, 8
        %v242 = vlaneseq
        %v243 = vshrl.u32 %v242, 7
        %v244 = vstv %s241
        %v245 = vadd.s32 %v244, %v243
        %vm246 = vcmp.lt.s32.totalorder %v245, 4
        %v247 = vsel %vm246, 1, 0
        %vm248 = vcmp.eq.s32.totalorder %v247, 1
        %v249 = vsel %vm248, %v239, -inf
        %v250 = vsel %vm248, %v240, -inf
        %v251 = vadd.f32 %v239, 0.0
        %v252 = vadd.f32 %v240, 0.0
        %v253 = vld [vmem:[#allocation2] sm:$0xff]
        %v254 = vld [vmem:[#allocation2 + $0x8] sm:$0xff]
        %v255 = vadd.f32 %v253, %v251
        %v256 = vadd.f32 %v254, %v252
        %257 = vst [vmem:[#allocation2] sm:$0xff] %v255
        %258 = vst [vmem:[#allocation2 + $0x8] sm:$0xff] %v256
        %v259 = vld [vmem:[#allocation3] sm:$0xff]
        %v260 = vld [vmem:[#allocation3 + $0x8] sm:$0xff]
        %v261 = vmax.f32 %v259, %v249
        %v262 = vmax.f32 %v260, %v250
        %263 = vst [vmem:[#allocation3] sm:$0xff] %v261
        %264 = vst [vmem:[#allocation3 + $0x8] sm:$0xff] %v262
        // Predicated region
        $region49: #{tpu_custom_call.1} parent=31 // pred_check
          %p265 = pneg %p228
        $region50: #{tpu_custom_call.1} parent=31 // pred_check_branch
          %267 = sbr.rel (%p265) target = $region52
        $region51: #{tpu_custom_call.1} parent=31 // pred_region
          %v268 = vld [vmem:[#allocation2] sm:$0xff]
          %v269 = vld [vmem:[#allocation2 + $0x8] sm:$0xff]
          %v270 = vrot.slane %v268, 4
          %v271 = vadd.f32 %v268, %v270
          %v272 = vrot.slane %v271, 2
          %v273 = vadd.f32 %v271, %v272
          %v274 = vrot.slane %v273, 1
          %v275 = vadd.f32 %v273, %v274
          %v276 = vrot.slane %v269, 4
          %v277 = vadd.f32 %v269, %v276
          %v278 = vrot.slane %v277, 2
          %v279 = vadd.f32 %v277, %v278
          %v280 = vrot.slane %v279, 1
          %v281 = vadd.f32 %v279, %v280
          %v282 = vmul.f32 %v275, 0.25
          %v283 = vmul.f32 %v281, 0.25
          %v284 = vld [vmem:[#allocation3] sm:$0xff]
          %v285 = vld [vmem:[#allocation3 + $0x8] sm:$0xff]
          %v286 = vrot.slane %v284, 4
          %v287 = vmax.f32 %v284, %v286
          %v288 = vrot.slane %v287, 2
          %v289 = vmax.f32 %v287, %v288
          %v290 = vrot.slane %v289, 1
          %v291 = vmax.f32 %v289, %v290
          %v292 = vrot.slane %v285, 4
          %v293 = vmax.f32 %v285, %v292
          %v294 = vrot.slane %v293, 2
          %v295 = vmax.f32 %v293, %v294
          %v296 = vrot.slane %v295, 1
          %v297 = vmax.f32 %v295, %v296
          %v298 = vld [vmem:[#allocation8] ss:$2 sm:$0x3]
          %s299 = scalar_lea.vmem [#allocation8], 1
          %v300 = vld [vmem:[%s299] ss:$2 sm:$0x3]
          %vm301 = vcmp.ge.s32.totalorder %v298, 3
          %vm302 = vcmp.lt.s32.totalorder %v298, 19
          %vm303 = vmand %vm301, %vm302
          %v304 = vsel %vm303, 1, 0
          %v305 = vcvt.s32.f32 %v304
          %vm306 = vcmp.ge.s32.totalorder %v298, 2
          %vm307 = vcmp.lt.s32.totalorder %v298, 18
          %vm308 = vmand %vm306, %vm307
          %v309 = vsel %vm308, 1, 0
          %v310 = vcvt.s32.f32 %v309
          %vm311 = vcmp.ge.s32.totalorder %v298, 1
          %vm312 = vcmp.lt.s32.totalorder %v298, 17
          %vm313 = vmand %vm311, %vm312
          %v314 = vsel %vm313, 1, 0
          %v315 = vcvt.s32.f32 %v314
          %vm316 = vcmp.ge.s32.totalorder %v298, 0
          %vm317 = vcmp.lt.s32.totalorder %v298, 16
          %vm318 = vmand %vm316, %vm317
          %v319 = vsel %vm318, 1, 0
          %v320 = vcvt.s32.f32 %v319
          %vm321 = vcmp.ge.s32.totalorder %v298, 4294967295
          %vm322 = vcmp.lt.s32.totalorder %v298, 15
          %vm323 = vmand %vm321, %vm322
          %v324 = vsel %vm323, 1, 0
          %v325 = vcvt.s32.f32 %v324
          %vm326 = vcmp.ge.s32.totalorder %v298, 4294967294
          %vm327 = vcmp.lt.s32.totalorder %v298, 14
          %vm328 = vmand %vm326, %vm327
          %v329 = vsel %vm328, 1, 0
          %v330 = vcvt.s32.f32 %v329
          %vm331 = vcmp.ge.s32.totalorder %v298, 4294967293
          %vm332 = vcmp.lt.s32.totalorder %v298, 13
          %vm333 = vmand %vm331, %vm332
          %v334 = vsel %vm333, 1, 0
          %v335 = vcvt.s32.f32 %v334
          %vm336 = vcmp.ge.s32.totalorder %v300, 3
          %vm337 = vcmp.lt.s32.totalorder %v300, 19
          %vm338 = vmand %vm336, %vm337
          %v339 = vsel %vm338, 1, 0
          %v340 = vcvt.s32.f32 %v339
          %vm341 = vcmp.ge.s32.totalorder %v300, 2
          %vm342 = vcmp.lt.s32.totalorder %v300, 18
          %vm343 = vmand %vm341, %vm342
          %v344 = vsel %vm343, 1, 0
          %v345 = vcvt.s32.f32 %v344
          %vm346 = vcmp.ge.s32.totalorder %v300, 1
          %vm347 = vcmp.lt.s32.totalorder %v300, 17
          %vm348 = vmand %vm346, %vm347
          %v349 = vsel %vm348, 1, 0
          %v350 = vcvt.s32.f32 %v349
          %vm351 = vcmp.ge.s32.totalorder %v300, 0
          %vm352 = vcmp.lt.s32.totalorder %v300, 16
          %vm353 = vmand %vm351, %vm352
          %v354 = vsel %vm353, 1, 0
          %v355 = vcvt.s32.f32 %v354
          %vm356 = vcmp.ge.s32.totalorder %v300, 4294967295
          %vm357 = vcmp.lt.s32.totalorder %v300, 15
          %vm358 = vmand %vm356, %vm357
          %v359 = vsel %vm358, 1, 0
          %v360 = vcvt.s32.f32 %v359
          %vm361 = vcmp.ge.s32.totalorder %v300, 4294967294
          %vm362 = vcmp.lt.s32.totalorder %v300, 14
          %vm363 = vmand %vm361, %vm362
          %v364 = vsel %vm363, 1, 0
          %v365 = vcvt.s32.f32 %v364
          %vm366 = vcmp.ge.s32.totalorder %v300, 4294967293
          %vm367 = vcmp.lt.s32.totalorder %v300, 13
          %vm368 = vmand %vm366, %vm367
          %v369 = vsel %vm368, 1, 0
          %v370 = vcvt.s32.f32 %v369
          %371 = vrot.lane.b32.xlu0 %v282, 48
          %v372 = vpop.permute.xlu0 %371
          %373 = vrot.lane.b32.xlu0 %v283, 48
          %v374 = vpop.permute.xlu0 %373
          %v375 = vlaneseq
          %v376 = vand.u32 %v375, 127
          %vm377 = vcmp.lt.s32.totalorder %v376, 48
          %v378 = vsel %vm377, %v372, %v374
          %v379 = vsel %vm377, %v374, %v372
          %380 = vrot.lane.b32.xlu0 %v291, 48
          %v381 = vpop.permute.xlu0 %380
          %382 = vrot.lane.b32.xlu0 %v297, 48
          %v383 = vpop.permute.xlu0 %382
          %v384 = vsel %vm377, %v381, %v383
          %v385 = vsel %vm377, %v383, %v381
          %s386 = sld [smem:[#allocation4]]
          %v387 = vstv %s386
          %v388 = vmul.f32 %v387, %v379
          %v389 = vmul.f32 %v387, %v378
          %s390 = sld [smem:[#allocation4 + $0x31]]
          %v391 = vstv %s390
          %v392 = vmul.f32 %v391, %v385
          %v393 = vmul.f32 %v391, %v384
          %v394 = vadd.f32 %v388, %v392
          %v395 = vadd.f32 %v389, %v393
          %396 = vrot.lane.b32.xlu0 %v394, 3
          %v397 = vpop.permute.xlu0 %396
          %398 = vrot.lane.b32.xlu0 %v395, 3
          %v399 = vpop.permute.xlu0 %398
          %vm400 = vcmp.lt.s32.totalorder %v376, 3
          %v401 = vsel %vm400, %v397, %v399
          %v402 = vsel %vm400, %v399, %v397
          %v405 = vcombine.low %v402, %v401
          %v407 = vunpack.c.l.s4 1966171168
          %v408 = vunpack.c.0.s8 %v407
          %v409 = vlaneseq
          %v410 = vshrl.u32 %v409, 7
          %v411 = vsub.s32 %v408, %v410
          %v412 = vrot.slane %v405, %v411
          %v414 = vunpack.c.l.s4 1966171168
          %v415 = vunpack.c.0.s8 %v414
          %v416 = vlaneseq
          %v417 = vshrl.u32 %v416, 7
          %v418 = vsub.s32 %v415, %v417
          %v419 = vrot.slane %v412, %v418
          %v421 = vmul.f32 %v305, %v419
          %v422 = vadd.f32 %v421, 0.0
          %s423 = sld [smem:[#allocation4 + $0x1]]
          %v424 = vstv %s423
          %v425 = vmul.f32 %v424, %v379
          %v426 = vmul.f32 %v424, %v378
          %s427 = sld [smem:[#allocation4 + $0x32]]
          %v428 = vstv %s427
          %v429 = vmul.f32 %v428, %v385
          %v430 = vmul.f32 %v428, %v384
          %v431 = vadd.f32 %v425, %v429
          %v432 = vadd.f32 %v426, %v430
          %433 = vrot.lane.b32.xlu0 %v431, 2
          %v434 = vpop.permute.xlu0 %433
          %435 = vrot.lane.b32.xlu0 %v432, 2
          %v436 = vpop.permute.xlu0 %435
          %vm437 = vcmp.lt.s32.totalorder %v376, 2
          %v438 = vsel %vm437, %v434, %v436
          %v439 = vsel %vm437, %v436, %v434
          %v442 = vcombine.low %v439, %v438
          %v444 = vunpack.c.l.s4 1966171168
          %v445 = vunpack.c.0.s8 %v444
          %v446 = vlaneseq
          %v447 = vshrl.u32 %v446, 7
          %v448 = vsub.s32 %v445, %v447
          %v449 = vrot.slane %v442, %v448
          %v451 = vunpack.c.l.s4 1966171168
          %v452 = vunpack.c.0.s8 %v451
          %v453 = vlaneseq
          %v454 = vshrl.u32 %v453, 7
          %v455 = vsub.s32 %v452, %v454
          %v456 = vrot.slane %v449, %v455
          %v458 = vmul.f32 %v310, %v456
          %v459 = vadd.f32 %v422, %v458
          %s460 = sld [smem:[#allocation4 + $0x2]]
          %v461 = vstv %s460
          %v462 = vmul.f32 %v461, %v379
          %v463 = vmul.f32 %v461, %v378
          %s464 = sld [smem:[#allocation4 + $0x33]]
          %v465 = vstv %s464
          %v466 = vmul.f32 %v465, %v385
          %v467 = vmul.f32 %v465, %v384
          %v468 = vadd.f32 %v462, %v466
          %v469 = vadd.f32 %v463, %v467
          %470 = vrot.lane.b32.xlu0 %v468, 1
          %v471 = vpop.permute.xlu0 %470
          %472 = vrot.lane.b32.xlu0 %v469, 1
          %v473 = vpop.permute.xlu0 %472
          %vm474 = vcmp.lt.s32.totalorder %v376, 1
          %v475 = vsel %vm474, %v471, %v473
          %v476 = vsel %vm474, %v473, %v471
          %v479 = vcombine.low %v476, %v475
          %v481 = vunpack.c.l.s4 1966171168
          %v482 = vunpack.c.0.s8 %v481
          %v483 = vlaneseq
          %v484 = vshrl.u32 %v483, 7
          %v485 = vsub.s32 %v482, %v484
          %v486 = vrot.slane %v479, %v485
          %v488 = vunpack.c.l.s4 1966171168
          %v489 = vunpack.c.0.s8 %v488
          %v490 = vlaneseq
          %v491 = vshrl.u32 %v490, 7
          %v492 = vsub.s32 %v489, %v491
          %v493 = vrot.slane %v486, %v492
          %v495 = vmul.f32 %v315, %v493
          %v496 = vadd.f32 %v459, %v495
          %s497 = sld [smem:[#allocation4 + $0x3]]
          %v498 = vstv %s497
          %v499 = vmul.f32 %v498, %v379
          %v500 = vmul.f32 %v498, %v378
          %s501 = sld [smem:[#allocation4 + $0x34]]
          %v502 = vstv %s501
          %v503 = vmul.f32 %v502, %v385
          %v504 = vmul.f32 %v502, %v384
          %v505 = vadd.f32 %v499, %v503
          %v506 = vadd.f32 %v500, %v504
          %v509 = vcombine.low %v505, %v506
          %v511 = vunpack.c.l.s4 1966171168
          %v512 = vunpack.c.0.s8 %v511
          %v513 = vlaneseq
          %v514 = vshrl.u32 %v513, 7
          %v515 = vsub.s32 %v512, %v514
          %v516 = vrot.slane %v509, %v515
          %v518 = vunpack.c.l.s4 1966171168
          %v519 = vunpack.c.0.s8 %v518
          %v520 = vlaneseq
          %v521 = vshrl.u32 %v520, 7
          %v522 = vsub.s32 %v519, %v521
          %v523 = vrot.slane %v516, %v522
          %v525 = vmul.f32 %v320, %v523
          %v526 = vadd.f32 %v496, %v525
          %s527 = sld [smem:[#allocation4 + $0x4]]
          %v528 = vstv %s527
          %v529 = vmul.f32 %v528, %v379
          %v530 = vmul.f32 %v528, %v378
          %s531 = sld [smem:[#allocation4 + $0x35]]
          %v532 = vstv %s531
          %v533 = vmul.f32 %v532, %v385
          %v534 = vmul.f32 %v532, %v384
          %v535 = vadd.f32 %v529, %v533
          %v536 = vadd.f32 %v530, %v534
          %537 = vrot.lane.b32.xlu0 %v535, 127
          %v538 = vpop.permute.xlu0 %537
          %539 = vrot.lane.b32.xlu0 %v536, 127
          %v540 = vpop.permute.xlu0 %539
          %vm541 = vcmp.lt.s32.totalorder %v376, 127
          %v542 = vsel %vm541, %v538, %v540
          %v543 = vsel %vm541, %v540, %v538
          %v546 = vcombine.low %v542, %v543
          %v548 = vunpack.c.l.s4 1966171168
          %v549 = vunpack.c.0.s8 %v548
          %v550 = vlaneseq
          %v551 = vshrl.u32 %v550, 7
          %v552 = vsub.s32 %v549, %v551
          %v553 = vrot.slane %v546, %v552
          %v555 = vunpack.c.l.s4 1966171168
          %v556 = vunpack.c.0.s8 %v555
          %v557 = vlaneseq
          %v558 = vshrl.u32 %v557, 7
          %v559 = vsub.s32 %v556, %v558
          %v560 = vrot.slane %v553, %v559
          %v562 = vmul.f32 %v325, %v560
          %v563 = vadd.f32 %v526, %v562
          %s564 = sld [smem:[#allocation4 + $0x5]]
          %v565 = vstv %s564
          %v566 = vmul.f32 %v565, %v379
          %v567 = vmul.f32 %v565, %v378
          %s568 = sld [smem:[#allocation4 + $0x36]]
          %v569 = vstv %s568
          %v570 = vmul.f32 %v569, %v385
          %v571 = vmul.f32 %v569, %v384
          %v572 = vadd.f32 %v566, %v570
          %v573 = vadd.f32 %v567, %v571
          %574 = vrot.lane.b32.xlu0 %v572, 126
          %v575 = vpop.permute.xlu0 %574
          %576 = vrot.lane.b32.xlu0 %v573, 126
          %v577 = vpop.permute.xlu0 %576
          %vm578 = vcmp.lt.s32.totalorder %v376, 126
          %v579 = vsel %vm578, %v575, %v577
          %v580 = vsel %vm578, %v577, %v575
          %v583 = vcombine.low %v579, %v580
          %v585 = vunpack.c.l.s4 1966171168
          %v586 = vunpack.c.0.s8 %v585
          %v587 = vlaneseq
          %v588 = vshrl.u32 %v587, 7
          %v589 = vsub.s32 %v586, %v588
          %v590 = vrot.slane %v583, %v589
          %v592 = vunpack.c.l.s4 1966171168
          %v593 = vunpack.c.0.s8 %v592
          %v594 = vlaneseq
          %v595 = vshrl.u32 %v594, 7
          %v596 = vsub.s32 %v593, %v595
          %v597 = vrot.slane %v590, %v596
          %v599 = vmul.f32 %v330, %v597
          %v600 = vadd.f32 %v563, %v599
          %s601 = sld [smem:[#allocation4 + $0x6]]
          %v602 = vstv %s601
          %v603 = vmul.f32 %v602, %v379
          %v604 = vmul.f32 %v602, %v378
          %s605 = sld [smem:[#allocation4 + $0x37]]
          %v606 = vstv %s605
          %v607 = vmul.f32 %v606, %v385
          %v608 = vmul.f32 %v606, %v384
          %v609 = vadd.f32 %v603, %v607
          %v610 = vadd.f32 %v604, %v608
          %611 = vrot.lane.b32.xlu0 %v609, 125
          %v612 = vpop.permute.xlu0 %611
          %613 = vrot.lane.b32.xlu0 %v610, 125
          %v614 = vpop.permute.xlu0 %613
          %vm615 = vcmp.lt.s32.totalorder %v376, 125
          %v616 = vsel %vm615, %v612, %v614
          %v617 = vsel %vm615, %v614, %v612
          %v620 = vcombine.low %v616, %v617
          %v622 = vunpack.c.l.s4 1966171168
          %v623 = vunpack.c.0.s8 %v622
          %v624 = vlaneseq
          %v625 = vshrl.u32 %v624, 7
          %v626 = vsub.s32 %v623, %v625
          %v627 = vrot.slane %v620, %v626
          %v629 = vunpack.c.l.s4 1966171168
          %v630 = vunpack.c.0.s8 %v629
          %v631 = vlaneseq
          %v632 = vshrl.u32 %v631, 7
          %v633 = vsub.s32 %v630, %v632
          %v634 = vrot.slane %v627, %v633
          %v636 = vmul.f32 %v335, %v634
          %v637 = vadd.f32 %v600, %v636
          %v638 = vmul.f32 %v340, %v637
          %v639 = vadd.f32 %v638, 0.0
          %640 = vrot.lane.b32.xlu0 %v282, 32
          %v641 = vpop.permute.xlu0 %640
          %642 = vrot.lane.b32.xlu0 %v283, 32
          %v643 = vpop.permute.xlu0 %642
          %vm644 = vcmp.lt.s32.totalorder %v376, 32
          %v645 = vsel %vm644, %v641, %v643
          %v646 = vsel %vm644, %v643, %v641
          %647 = vrot.lane.b32.xlu0 %v291, 32
          %v648 = vpop.permute.xlu0 %647
          %649 = vrot.lane.b32.xlu0 %v297, 32
          %v650 = vpop.permute.xlu0 %649
          %v651 = vsel %vm644, %v648, %v650
          %v652 = vsel %vm644, %v650, %v648
          %s653 = sld [smem:[#allocation4 + $0x7]]
          %v654 = vstv %s653
          %v655 = vmul.f32 %v654, %v646
          %v656 = vmul.f32 %v654, %v645
          %s657 = sld [smem:[#allocation4 + $0x38]]
          %v658 = vstv %s657
          %v659 = vmul.f32 %v658, %v652
          %v660 = vmul.f32 %v658, %v651
          %v661 = vadd.f32 %v655, %v659
          %v662 = vadd.f32 %v656, %v660
          %663 = vrot.lane.b32.xlu0 %v661, 3
          %v664 = vpop.permute.xlu0 %663
          %665 = vrot.lane.b32.xlu0 %v662, 3
          %v666 = vpop.permute.xlu0 %665
          %v667 = vsel %vm400, %v664, %v666
          %v668 = vsel %vm400, %v666, %v664
          %v671 = vcombine.low %v668, %v667
          %v673 = vunpack.c.l.s4 1966171168
          %v674 = vunpack.c.0.s8 %v673
          %v675 = vlaneseq
          %v676 = vshrl.u32 %v675, 7
          %v677 = vsub.s32 %v674, %v676
          %v678 = vrot.slane %v671, %v677
          %v680 = vunpack.c.l.s4 1966171168
          %v681 = vunpack.c.0.s8 %v680
          %v682 = vlaneseq
          %v683 = vshrl.u32 %v682, 7
          %v684 = vsub.s32 %v681, %v683
          %v685 = vrot.slane %v678, %v684
          %v687 = vmul.f32 %v305, %v685
          %v688 = vadd.f32 %v687, 0.0
          %s689 = sld [smem:[#allocation4 + $0x8]]
          %v690 = vstv %s689
          %v691 = vmul.f32 %v690, %v646
          %v692 = vmul.f32 %v690, %v645
          %s693 = sld [smem:[#allocation4 + $0x39]]
          %v694 = vstv %s693
          %v695 = vmul.f32 %v694, %v652
          %v696 = vmul.f32 %v694, %v651
          %v697 = vadd.f32 %v691, %v695
          %v698 = vadd.f32 %v692, %v696
          %699 = vrot.lane.b32.xlu0 %v697, 2
          %v700 = vpop.permute.xlu0 %699
          %701 = vrot.lane.b32.xlu0 %v698, 2
          %v702 = vpop.permute.xlu0 %701
          %v703 = vsel %vm437, %v700, %v702
          %v704 = vsel %vm437, %v702, %v700
          %v707 = vcombine.low %v704, %v703
          %v709 = vunpack.c.l.s4 1966171168
          %v710 = vunpack.c.0.s8 %v709
          %v711 = vlaneseq
          %v712 = vshrl.u32 %v711, 7
          %v713 = vsub.s32 %v710, %v712
          %v714 = vrot.slane %v707, %v713
          %v716 = vunpack.c.l.s4 1966171168
          %v717 = vunpack.c.0.s8 %v716
          %v718 = vlaneseq
          %v719 = vshrl.u32 %v718, 7
          %v720 = vsub.s32 %v717, %v719
          %v721 = vrot.slane %v714, %v720
          %v723 = vmul.f32 %v310, %v721
          %v724 = vadd.f32 %v688, %v723
          %s725 = sld [smem:[#allocation4 + $0x9]]
          %v726 = vstv %s725
          %v727 = vmul.f32 %v726, %v646
          %v728 = vmul.f32 %v726, %v645
          %s729 = sld [smem:[#allocation4 + $0x3a]]
          %v730 = vstv %s729
          %v731 = vmul.f32 %v730, %v652
          %v732 = vmul.f32 %v730, %v651
          %v733 = vadd.f32 %v727, %v731
          %v734 = vadd.f32 %v728, %v732
          %735 = vrot.lane.b32.xlu0 %v733, 1
          %v736 = vpop.permute.xlu0 %735
          %737 = vrot.lane.b32.xlu0 %v734, 1
          %v738 = vpop.permute.xlu0 %737
          %v739 = vsel %vm474, %v736, %v738
          %v740 = vsel %vm474, %v738, %v736
          %v743 = vcombine.low %v740, %v739
          %v745 = vunpack.c.l.s4 1966171168
          %v746 = vunpack.c.0.s8 %v745
          %v747 = vlaneseq
          %v748 = vshrl.u32 %v747, 7
          %v749 = vsub.s32 %v746, %v748
          %v750 = vrot.slane %v743, %v749
          %v752 = vunpack.c.l.s4 1966171168
          %v753 = vunpack.c.0.s8 %v752
          %v754 = vlaneseq
          %v755 = vshrl.u32 %v754, 7
          %v756 = vsub.s32 %v753, %v755
          %v757 = vrot.slane %v750, %v756
          %v759 = vmul.f32 %v315, %v757
          %v760 = vadd.f32 %v724, %v759
          %s761 = sld [smem:[#allocation4 + $0xa]]
          %v762 = vstv %s761
          %v763 = vmul.f32 %v762, %v646
          %v764 = vmul.f32 %v762, %v645
          %s765 = sld [smem:[#allocation4 + $0x3b]]
          %v766 = vstv %s765
          %v767 = vmul.f32 %v766, %v652
          %v768 = vmul.f32 %v766, %v651
          %v769 = vadd.f32 %v763, %v767
          %v770 = vadd.f32 %v764, %v768
          %v773 = vcombine.low %v769, %v770
          %v775 = vunpack.c.l.s4 1966171168
          %v776 = vunpack.c.0.s8 %v775
          %v777 = vlaneseq
          %v778 = vshrl.u32 %v777, 7
          %v779 = vsub.s32 %v776, %v778
          %v780 = vrot.slane %v773, %v779
          %v782 = vunpack.c.l.s4 1966171168
          %v783 = vunpack.c.0.s8 %v782
          %v784 = vlaneseq
          %v785 = vshrl.u32 %v784, 7
          %v786 = vsub.s32 %v783, %v785
          %v787 = vrot.slane %v780, %v786
          %v789 = vmul.f32 %v320, %v787
          %v790 = vadd.f32 %v760, %v789
          %s791 = sld [smem:[#allocation4 + $0xb]]
          %v792 = vstv %s791
          %v793 = vmul.f32 %v792, %v646
          %v794 = vmul.f32 %v792, %v645
          %s795 = sld [smem:[#allocation4 + $0x3c]]
          %v796 = vstv %s795
          %v797 = vmul.f32 %v796, %v652
          %v798 = vmul.f32 %v796, %v651
          %v799 = vadd.f32 %v793, %v797
          %v800 = vadd.f32 %v794, %v798
          %801 = vrot.lane.b32.xlu0 %v799, 127
          %v802 = vpop.permute.xlu0 %801
          %803 = vrot.lane.b32.xlu0 %v800, 127
          %v804 = vpop.permute.xlu0 %803
          %v805 = vsel %vm541, %v802, %v804
          %v806 = vsel %vm541, %v804, %v802
          %v809 = vcombine.low %v805, %v806
          %v811 = vunpack.c.l.s4 1966171168
          %v812 = vunpack.c.0.s8 %v811
          %v813 = vlaneseq
          %v814 = vshrl.u32 %v813, 7
          %v815 = vsub.s32 %v812, %v814
          %v816 = vrot.slane %v809, %v815
          %v818 = vunpack.c.l.s4 1966171168
          %v819 = vunpack.c.0.s8 %v818
          %v820 = vlaneseq
          %v821 = vshrl.u32 %v820, 7
          %v822 = vsub.s32 %v819, %v821
          %v823 = vrot.slane %v816, %v822
          %v825 = vmul.f32 %v325, %v823
          %v826 = vadd.f32 %v790, %v825
          %s827 = sld [smem:[#allocation4 + $0xc]]
          %v828 = vstv %s827
          %v829 = vmul.f32 %v828, %v646
          %v830 = vmul.f32 %v828, %v645
          %s831 = sld [smem:[#allocation4 + $0x3d]]
          %v832 = vstv %s831
          %v833 = vmul.f32 %v832, %v652
          %v834 = vmul.f32 %v832, %v651
          %v835 = vadd.f32 %v829, %v833
          %v836 = vadd.f32 %v830, %v834
          %837 = vrot.lane.b32.xlu0 %v835, 126
          %v838 = vpop.permute.xlu0 %837
          %839 = vrot.lane.b32.xlu0 %v836, 126
          %v840 = vpop.permute.xlu0 %839
          %v841 = vsel %vm578, %v838, %v840
          %v842 = vsel %vm578, %v840, %v838
          %v845 = vcombine.low %v841, %v842
          %v847 = vunpack.c.l.s4 1966171168
          %v848 = vunpack.c.0.s8 %v847
          %v849 = vlaneseq
          %v850 = vshrl.u32 %v849, 7
          %v851 = vsub.s32 %v848, %v850
          %v852 = vrot.slane %v845, %v851
          %v854 = vunpack.c.l.s4 1966171168
          %v855 = vunpack.c.0.s8 %v854
          %v856 = vlaneseq
          %v857 = vshrl.u32 %v856, 7
          %v858 = vsub.s32 %v855, %v857
          %v859 = vrot.slane %v852, %v858
          %v861 = vmul.f32 %v330, %v859
          %v862 = vadd.f32 %v826, %v861
          %s863 = sld [smem:[#allocation4 + $0xd]]
          %v864 = vstv %s863
          %v865 = vmul.f32 %v864, %v646
          %v866 = vmul.f32 %v864, %v645
          %s867 = sld [smem:[#allocation4 + $0x3e]]
          %v868 = vstv %s867
          %v869 = vmul.f32 %v868, %v652
          %v870 = vmul.f32 %v868, %v651
          %v871 = vadd.f32 %v865, %v869
          %v872 = vadd.f32 %v866, %v870
          %873 = vrot.lane.b32.xlu0 %v871, 125
          %v874 = vpop.permute.xlu0 %873
          %875 = vrot.lane.b32.xlu0 %v872, 125
          %v876 = vpop.permute.xlu0 %875
          %v877 = vsel %vm615, %v874, %v876
          %v878 = vsel %vm615, %v876, %v874
          %v881 = vcombine.low %v877, %v878
          %v883 = vunpack.c.l.s4 1966171168
          %v884 = vunpack.c.0.s8 %v883
          %v885 = vlaneseq
          %v886 = vshrl.u32 %v885, 7
          %v887 = vsub.s32 %v884, %v886
          %v888 = vrot.slane %v881, %v887
          %v890 = vunpack.c.l.s4 1966171168
          %v891 = vunpack.c.0.s8 %v890
          %v892 = vlaneseq
          %v893 = vshrl.u32 %v892, 7
          %v894 = vsub.s32 %v891, %v893
          %v895 = vrot.slane %v888, %v894
          %v897 = vmul.f32 %v335, %v895
          %v898 = vadd.f32 %v862, %v897
          %v899 = vmul.f32 %v345, %v898
          %v900 = vadd.f32 %v639, %v899
          %901 = vrot.lane.b32.xlu0 %v282, 16
          %v902 = vpop.permute.xlu0 %901
          %903 = vrot.lane.b32.xlu0 %v283, 16
          %v904 = vpop.permute.xlu0 %903
          %vm905 = vcmp.lt.s32.totalorder %v376, 16
          %v906 = vsel %vm905, %v902, %v904
          %v907 = vsel %vm905, %v904, %v902
          %908 = vrot.lane.b32.xlu0 %v291, 16
          %v909 = vpop.permute.xlu0 %908
          %910 = vrot.lane.b32.xlu0 %v297, 16
          %v911 = vpop.permute.xlu0 %910
          %v912 = vsel %vm905, %v909, %v911
          %v913 = vsel %vm905, %v911, %v909
          %s914 = sld [smem:[#allocation4 + $0xe]]
          %v915 = vstv %s914
          %v916 = vmul.f32 %v915, %v907
          %v917 = vmul.f32 %v915, %v906
          %s918 = sld [smem:[#allocation4 + $0x3f]]
          %v919 = vstv %s918
          %v920 = vmul.f32 %v919, %v913
          %v921 = vmul.f32 %v919, %v912
          %v922 = vadd.f32 %v916, %v920
          %v923 = vadd.f32 %v917, %v921
          %924 = vrot.lane.b32.xlu0 %v922, 3
          %v925 = vpop.permute.xlu0 %924
          %926 = vrot.lane.b32.xlu0 %v923, 3
          %v927 = vpop.permute.xlu0 %926
          %v928 = vsel %vm400, %v925, %v927
          %v929 = vsel %vm400, %v927, %v925
          %v932 = vcombine.low %v929, %v928
          %v934 = vunpack.c.l.s4 1966171168
          %v935 = vunpack.c.0.s8 %v934
          %v936 = vlaneseq
          %v937 = vshrl.u32 %v936, 7
          %v938 = vsub.s32 %v935, %v937
          %v939 = vrot.slane %v932, %v938
          %v941 = vunpack.c.l.s4 1966171168
          %v942 = vunpack.c.0.s8 %v941
          %v943 = vlaneseq
          %v944 = vshrl.u32 %v943, 7
          %v945 = vsub.s32 %v942, %v944
          %v946 = vrot.slane %v939, %v945
          %v948 = vmul.f32 %v305, %v946
          %v949 = vadd.f32 %v948, 0.0
          %s950 = sld [smem:[#allocation4 + $0xf]]
          %v951 = vstv %s950
          %v952 = vmul.f32 %v951, %v907
          %v953 = vmul.f32 %v951, %v906
          %s954 = sld [smem:[#allocation4 + $0x40]]
          %v955 = vstv %s954
          %v956 = vmul.f32 %v955, %v913
          %v957 = vmul.f32 %v955, %v912
          %v958 = vadd.f32 %v952, %v956
          %v959 = vadd.f32 %v953, %v957
          %960 = vrot.lane.b32.xlu0 %v958, 2
          %v961 = vpop.permute.xlu0 %960
          %962 = vrot.lane.b32.xlu0 %v959, 2
          %v963 = vpop.permute.xlu0 %962
          %v964 = vsel %vm437, %v961, %v963
          %v965 = vsel %vm437, %v963, %v961
          %v968 = vcombine.low %v965, %v964
          %v970 = vunpack.c.l.s4 1966171168
          %v971 = vunpack.c.0.s8 %v970
          %v972 = vlaneseq
          %v973 = vshrl.u32 %v972, 7
          %v974 = vsub.s32 %v971, %v973
          %v975 = vrot.slane %v968, %v974
          %v977 = vunpack.c.l.s4 1966171168
          %v978 = vunpack.c.0.s8 %v977
          %v979 = vlaneseq
          %v980 = vshrl.u32 %v979, 7
          %v981 = vsub.s32 %v978, %v980
          %v982 = vrot.slane %v975, %v981
          %v984 = vmul.f32 %v310, %v982
          %v985 = vadd.f32 %v949, %v984
          %s986 = sld [smem:[#allocation4 + $0x10]]
          %v987 = vstv %s986
          %v988 = vmul.f32 %v987, %v907
          %v989 = vmul.f32 %v987, %v906
          %s990 = sld [smem:[#allocation4 + $0x41]]
          %v991 = vstv %s990
          %v992 = vmul.f32 %v991, %v913
          %v993 = vmul.f32 %v991, %v912
          %v994 = vadd.f32 %v988, %v992
          %v995 = vadd.f32 %v989, %v993
          %996 = vrot.lane.b32.xlu0 %v994, 1
          %v997 = vpop.permute.xlu0 %996
          %998 = vrot.lane.b32.xlu0 %v995, 1
          %v999 = vpop.permute.xlu0 %998
          %v1000 = vsel %vm474, %v997, %v999
          %v1001 = vsel %vm474, %v999, %v997
          %v1004 = vcombine.low %v1001, %v1000
          %v1006 = vunpack.c.l.s4 1966171168
          %v1007 = vunpack.c.0.s8 %v1006
          %v1008 = vlaneseq
          %v1009 = vshrl.u32 %v1008, 7
          %v1010 = vsub.s32 %v1007, %v1009
          %v1011 = vrot.slane %v1004, %v1010
          %v1013 = vunpack.c.l.s4 1966171168
          %v1014 = vunpack.c.0.s8 %v1013
          %v1015 = vlaneseq
          %v1016 = vshrl.u32 %v1015, 7
          %v1017 = vsub.s32 %v1014, %v1016
          %v1018 = vrot.slane %v1011, %v1017
          %v1020 = vmul.f32 %v315, %v1018
          %v1021 = vadd.f32 %v985, %v1020
          %s1022 = sld [smem:[#allocation4 + $0x11]]
          %v1023 = vstv %s1022
          %v1024 = vmul.f32 %v1023, %v907
          %v1025 = vmul.f32 %v1023, %v906
          %s1026 = sld [smem:[#allocation4 + $0x42]]
          %v1027 = vstv %s1026
          %v1028 = vmul.f32 %v1027, %v913
          %v1029 = vmul.f32 %v1027, %v912
          %v1030 = vadd.f32 %v1024, %v1028
          %v1031 = vadd.f32 %v1025, %v1029
          %v1034 = vcombine.low %v1030, %v1031
          %v1036 = vunpack.c.l.s4 1966171168
          %v1037 = vunpack.c.0.s8 %v1036
          %v1038 = vlaneseq
          %v1039 = vshrl.u32 %v1038, 7
          %v1040 = vsub.s32 %v1037, %v1039
          %v1041 = vrot.slane %v1034, %v1040
          %v1043 = vunpack.c.l.s4 1966171168
          %v1044 = vunpack.c.0.s8 %v1043
          %v1045 = vlaneseq
          %v1046 = vshrl.u32 %v1045, 7
          %v1047 = vsub.s32 %v1044, %v1046
          %v1048 = vrot.slane %v1041, %v1047
          %v1050 = vmul.f32 %v320, %v1048
          %v1051 = vadd.f32 %v1021, %v1050
          %s1052 = sld [smem:[#allocation4 + $0x12]]
          %v1053 = vstv %s1052
          %v1054 = vmul.f32 %v1053, %v907
          %v1055 = vmul.f32 %v1053, %v906
          %s1056 = sld [smem:[#allocation4 + $0x43]]
          %v1057 = vstv %s1056
          %v1058 = vmul.f32 %v1057, %v913
          %v1059 = vmul.f32 %v1057, %v912
          %v1060 = vadd.f32 %v1054, %v1058
          %v1061 = vadd.f32 %v1055, %v1059
          %1062 = vrot.lane.b32.xlu0 %v1060, 127
          %v1063 = vpop.permute.xlu0 %1062
          %1064 = vrot.lane.b32.xlu0 %v1061, 127
          %v1065 = vpop.permute.xlu0 %1064
          %v1066 = vsel %vm541, %v1063, %v1065
          %v1067 = vsel %vm541, %v1065, %v1063
          %v1070 = vcombine.low %v1066, %v1067
          %v1072 = vunpack.c.l.s4 1966171168
          %v1073 = vunpack.c.0.s8 %v1072
          %v1074 = vlaneseq
          %v1075 = vshrl.u32 %v1074, 7
          %v1076 = vsub.s32 %v1073, %v1075
          %v1077 = vrot.slane %v1070, %v1076
          %v1079 = vunpack.c.l.s4 1966171168
          %v1080 = vunpack.c.0.s8 %v1079
          %v1081 = vlaneseq
          %v1082 = vshrl.u32 %v1081, 7
          %v1083 = vsub.s32 %v1080, %v1082
          %v1084 = vrot.slane %v1077, %v1083
          %v1086 = vmul.f32 %v325, %v1084
          %v1087 = vadd.f32 %v1051, %v1086
          %s1088 = sld [smem:[#allocation4 + $0x13]]
          %v1089 = vstv %s1088
          %v1090 = vmul.f32 %v1089, %v907
          %v1091 = vmul.f32 %v1089, %v906
          %s1092 = sld [smem:[#allocation4 + $0x44]]
          %v1093 = vstv %s1092
          %v1094 = vmul.f32 %v1093, %v913
          %v1095 = vmul.f32 %v1093, %v912
          %v1096 = vadd.f32 %v1090, %v1094
          %v1097 = vadd.f32 %v1091, %v1095
          %1098 = vrot.lane.b32.xlu0 %v1096, 126
          %v1099 = vpop.permute.xlu0 %1098
          %1100 = vrot.lane.b32.xlu0 %v1097, 126
          %v1101 = vpop.permute.xlu0 %1100
          %v1102 = vsel %vm578, %v1099, %v1101
          %v1103 = vsel %vm578, %v1101, %v1099
          %v1106 = vcombine.low %v1102, %v1103
          %v1108 = vunpack.c.l.s4 1966171168
          %v1109 = vunpack.c.0.s8 %v1108
          %v1110 = vlaneseq
          %v1111 = vshrl.u32 %v1110, 7
          %v1112 = vsub.s32 %v1109, %v1111
          %v1113 = vrot.slane %v1106, %v1112
          %v1115 = vunpack.c.l.s4 1966171168
          %v1116 = vunpack.c.0.s8 %v1115
          %v1117 = vlaneseq
          %v1118 = vshrl.u32 %v1117, 7
          %v1119 = vsub.s32 %v1116, %v1118
          %v1120 = vrot.slane %v1113, %v1119
          %v1122 = vmul.f32 %v330, %v1120
          %v1123 = vadd.f32 %v1087, %v1122
          %s1124 = sld [smem:[#allocation4 + $0x14]]
          %v1125 = vstv %s1124
          %v1126 = vmul.f32 %v1125, %v907
          %v1127 = vmul.f32 %v1125, %v906
          %s1128 = sld [smem:[#allocation4 + $0x45]]
          %v1129 = vstv %s1128
          %v1130 = vmul.f32 %v1129, %v913
          %v1131 = vmul.f32 %v1129, %v912
          %v1132 = vadd.f32 %v1126, %v1130
          %v1133 = vadd.f32 %v1127, %v1131
          %1134 = vrot.lane.b32.xlu0 %v1132, 125
          %v1135 = vpop.permute.xlu0 %1134
          %1136 = vrot.lane.b32.xlu0 %v1133, 125
          %v1137 = vpop.permute.xlu0 %1136
          %v1138 = vsel %vm615, %v1135, %v1137
          %v1139 = vsel %vm615, %v1137, %v1135
          %v1142 = vcombine.low %v1138, %v1139
          %v1144 = vunpack.c.l.s4 1966171168
          %v1145 = vunpack.c.0.s8 %v1144
          %v1146 = vlaneseq
          %v1147 = vshrl.u32 %v1146, 7
          %v1148 = vsub.s32 %v1145, %v1147
          %v1149 = vrot.slane %v1142, %v1148
          %v1151 = vunpack.c.l.s4 1966171168
          %v1152 = vunpack.c.0.s8 %v1151
          %v1153 = vlaneseq
          %v1154 = vshrl.u32 %v1153, 7
          %v1155 = vsub.s32 %v1152, %v1154
          %v1156 = vrot.slane %v1149, %v1155
          %v1158 = vmul.f32 %v335, %v1156
          %v1159 = vadd.f32 %v1123, %v1158
          %v1160 = vmul.f32 %v350, %v1159
          %v1161 = vadd.f32 %v900, %v1160
          %s1162 = sld [smem:[#allocation4 + $0x15]]
          %v1163 = vstv %s1162
          %v1164 = vmul.f32 %v1163, %v282
          %v1165 = vmul.f32 %v1163, %v283
          %s1166 = sld [smem:[#allocation4 + $0x46]]
          %v1167 = vstv %s1166
          %v1168 = vmul.f32 %v1167, %v291
          %v1169 = vmul.f32 %v1167, %v297
          %v1170 = vadd.f32 %v1164, %v1168
          %v1171 = vadd.f32 %v1165, %v1169
          %1172 = vrot.lane.b32.xlu0 %v1170, 3
          %v1173 = vpop.permute.xlu0 %1172
          %1174 = vrot.lane.b32.xlu0 %v1171, 3
          %v1175 = vpop.permute.xlu0 %1174
          %v1176 = vsel %vm400, %v1173, %v1175
          %v1177 = vsel %vm400, %v1175, %v1173
          %v1180 = vcombine.low %v1177, %v1176
          %v1182 = vunpack.c.l.s4 1966171168
          %v1183 = vunpack.c.0.s8 %v1182
          %v1184 = vlaneseq
          %v1185 = vshrl.u32 %v1184, 7
          %v1186 = vsub.s32 %v1183, %v1185
          %v1187 = vrot.slane %v1180, %v1186
          %v1189 = vunpack.c.l.s4 1966171168
          %v1190 = vunpack.c.0.s8 %v1189
          %v1191 = vlaneseq
          %v1192 = vshrl.u32 %v1191, 7
          %v1193 = vsub.s32 %v1190, %v1192
          %v1194 = vrot.slane %v1187, %v1193
          %v1196 = vmul.f32 %v305, %v1194
          %v1197 = vadd.f32 %v1196, 0.0
          %s1198 = sld [smem:[#allocation4 + $0x16]]
          %v1199 = vstv %s1198
          %v1200 = vmul.f32 %v1199, %v282
          %v1201 = vmul.f32 %v1199, %v283
          %s1202 = sld [smem:[#allocation4 + $0x47]]
          %v1203 = vstv %s1202
          %v1204 = vmul.f32 %v1203, %v291
          %v1205 = vmul.f32 %v1203, %v297
          %v1206 = vadd.f32 %v1200, %v1204
          %v1207 = vadd.f32 %v1201, %v1205
          %1208 = vrot.lane.b32.xlu0 %v1206, 2
          %v1209 = vpop.permute.xlu0 %1208
          %1210 = vrot.lane.b32.xlu0 %v1207, 2
          %v1211 = vpop.permute.xlu0 %1210
          %v1212 = vsel %vm437, %v1209, %v1211
          %v1213 = vsel %vm437, %v1211, %v1209
          %v1216 = vcombine.low %v1213, %v1212
          %v1218 = vunpack.c.l.s4 1966171168
          %v1219 = vunpack.c.0.s8 %v1218
          %v1220 = vlaneseq
          %v1221 = vshrl.u32 %v1220, 7
          %v1222 = vsub.s32 %v1219, %v1221
          %v1223 = vrot.slane %v1216, %v1222
          %v1225 = vunpack.c.l.s4 1966171168
          %v1226 = vunpack.c.0.s8 %v1225
          %v1227 = vlaneseq
          %v1228 = vshrl.u32 %v1227, 7
          %v1229 = vsub.s32 %v1226, %v1228
          %v1230 = vrot.slane %v1223, %v1229
          %v1232 = vmul.f32 %v310, %v1230
          %v1233 = vadd.f32 %v1197, %v1232
          %s1234 = sld [smem:[#allocation4 + $0x17]]
          %v1235 = vstv %s1234
          %v1236 = vmul.f32 %v1235, %v282
          %v1237 = vmul.f32 %v1235, %v283
          %s1238 = sld [smem:[#allocation4 + $0x48]]
          %v1239 = vstv %s1238
          %v1240 = vmul.f32 %v1239, %v291
          %v1241 = vmul.f32 %v1239, %v297
          %v1242 = vadd.f32 %v1236, %v1240
          %v1243 = vadd.f32 %v1237, %v1241
          %1244 = vrot.lane.b32.xlu0 %v1242, 1
          %v1245 = vpop.permute.xlu0 %1244
          %1246 = vrot.lane.b32.xlu0 %v1243, 1
          %v1247 = vpop.permute.xlu0 %1246
          %v1248 = vsel %vm474, %v1245, %v1247
          %v1249 = vsel %vm474, %v1247, %v1245
          %v1252 = vcombine.low %v1249, %v1248
          %v1254 = vunpack.c.l.s4 1966171168
          %v1255 = vunpack.c.0.s8 %v1254
          %v1256 = vlaneseq
          %v1257 = vshrl.u32 %v1256, 7
          %v1258 = vsub.s32 %v1255, %v1257
          %v1259 = vrot.slane %v1252, %v1258
          %v1261 = vunpack.c.l.s4 1966171168
          %v1262 = vunpack.c.0.s8 %v1261
          %v1263 = vlaneseq
          %v1264 = vshrl.u32 %v1263, 7
          %v1265 = vsub.s32 %v1262, %v1264
          %v1266 = vrot.slane %v1259, %v1265
          %v1268 = vmul.f32 %v315, %v1266
          %v1269 = vadd.f32 %v1233, %v1268
          %s1270 = sld [smem:[#allocation4 + $0x18]]
          %v1271 = vstv %s1270
          %v1272 = vmul.f32 %v1271, %v282
          %v1273 = vmul.f32 %v1271, %v283
          %s1274 = sld [smem:[#allocation4 + $0x49]]
          %v1275 = vstv %s1274
          %v1276 = vmul.f32 %v1275, %v291
          %v1277 = vmul.f32 %v1275, %v297
          %v1278 = vadd.f32 %v1272, %v1276
          %v1279 = vadd.f32 %v1273, %v1277
          %v1282 = vcombine.low %v1278, %v1279
          %v1284 = vunpack.c.l.s4 1966171168
          %v1285 = vunpack.c.0.s8 %v1284
          %v1286 = vlaneseq
          %v1287 = vshrl.u32 %v1286, 7
          %v1288 = vsub.s32 %v1285, %v1287
          %v1289 = vrot.slane %v1282, %v1288
          %v1291 = vunpack.c.l.s4 1966171168
          %v1292 = vunpack.c.0.s8 %v1291
          %v1293 = vlaneseq
          %v1294 = vshrl.u32 %v1293, 7
          %v1295 = vsub.s32 %v1292, %v1294
          %v1296 = vrot.slane %v1289, %v1295
          %v1298 = vmul.f32 %v320, %v1296
          %v1299 = vadd.f32 %v1269, %v1298
          %s1300 = sld [smem:[#allocation4 + $0x19]]
          %v1301 = vstv %s1300
          %v1302 = vmul.f32 %v1301, %v282
          %v1303 = vmul.f32 %v1301, %v283
          %s1304 = sld [smem:[#allocation4 + $0x4a]]
          %v1305 = vstv %s1304
          %v1306 = vmul.f32 %v1305, %v291
          %v1307 = vmul.f32 %v1305, %v297
          %v1308 = vadd.f32 %v1302, %v1306
          %v1309 = vadd.f32 %v1303, %v1307
          %1310 = vrot.lane.b32.xlu0 %v1308, 127
          %v1311 = vpop.permute.xlu0 %1310
          %1312 = vrot.lane.b32.xlu0 %v1309, 127
          %v1313 = vpop.permute.xlu0 %1312
          %v1314 = vsel %vm541, %v1311, %v1313
          %v1315 = vsel %vm541, %v1313, %v1311
          %v1318 = vcombine.low %v1314, %v1315
          %v1320 = vunpack.c.l.s4 1966171168
          %v1321 = vunpack.c.0.s8 %v1320
          %v1322 = vlaneseq
          %v1323 = vshrl.u32 %v1322, 7
          %v1324 = vsub.s32 %v1321, %v1323
          %v1325 = vrot.slane %v1318, %v1324
          %v1327 = vunpack.c.l.s4 1966171168
          %v1328 = vunpack.c.0.s8 %v1327
          %v1329 = vlaneseq
          %v1330 = vshrl.u32 %v1329, 7
          %v1331 = vsub.s32 %v1328, %v1330
          %v1332 = vrot.slane %v1325, %v1331
          %v1334 = vmul.f32 %v325, %v1332
          %v1335 = vadd.f32 %v1299, %v1334
          %s1336 = sld [smem:[#allocation4 + $0x1a]]
          %v1337 = vstv %s1336
          %v1338 = vmul.f32 %v1337, %v282
          %v1339 = vmul.f32 %v1337, %v283
          %s1340 = sld [smem:[#allocation4 + $0x4b]]
          %v1341 = vstv %s1340
          %v1342 = vmul.f32 %v1341, %v291
          %v1343 = vmul.f32 %v1341, %v297
          %v1344 = vadd.f32 %v1338, %v1342
          %v1345 = vadd.f32 %v1339, %v1343
          %1346 = vrot.lane.b32.xlu0 %v1344, 126
          %v1347 = vpop.permute.xlu0 %1346
          %1348 = vrot.lane.b32.xlu0 %v1345, 126
          %v1349 = vpop.permute.xlu0 %1348
          %v1350 = vsel %vm578, %v1347, %v1349
          %v1351 = vsel %vm578, %v1349, %v1347
          %v1354 = vcombine.low %v1350, %v1351
          %v1356 = vunpack.c.l.s4 1966171168
          %v1357 = vunpack.c.0.s8 %v1356
          %v1358 = vlaneseq
          %v1359 = vshrl.u32 %v1358, 7
          %v1360 = vsub.s32 %v1357, %v1359
          %v1361 = vrot.slane %v1354, %v1360
          %v1363 = vunpack.c.l.s4 1966171168
          %v1364 = vunpack.c.0.s8 %v1363
          %v1365 = vlaneseq
          %v1366 = vshrl.u32 %v1365, 7
          %v1367 = vsub.s32 %v1364, %v1366
          %v1368 = vrot.slane %v1361, %v1367
          %v1370 = vmul.f32 %v330, %v1368
          %v1371 = vadd.f32 %v1335, %v1370
          %s1372 = sld [smem:[#allocation4 + $0x1b]]
          %v1373 = vstv %s1372
          %v1374 = vmul.f32 %v1373, %v282
          %v1375 = vmul.f32 %v1373, %v283
          %s1376 = sld [smem:[#allocation4 + $0x4c]]
          %v1377 = vstv %s1376
          %v1378 = vmul.f32 %v1377, %v291
          %v1379 = vmul.f32 %v1377, %v297
          %v1380 = vadd.f32 %v1374, %v1378
          %v1381 = vadd.f32 %v1375, %v1379
          %1382 = vrot.lane.b32.xlu0 %v1380, 125
          %v1383 = vpop.permute.xlu0 %1382
          %1384 = vrot.lane.b32.xlu0 %v1381, 125
          %v1385 = vpop.permute.xlu0 %1384
          %v1386 = vsel %vm615, %v1383, %v1385
          %v1387 = vsel %vm615, %v1385, %v1383
          %v1390 = vcombine.low %v1386, %v1387
          %v1392 = vunpack.c.l.s4 1966171168
          %v1393 = vunpack.c.0.s8 %v1392
          %v1394 = vlaneseq
          %v1395 = vshrl.u32 %v1394, 7
          %v1396 = vsub.s32 %v1393, %v1395
          %v1397 = vrot.slane %v1390, %v1396
          %v1399 = vunpack.c.l.s4 1966171168
          %v1400 = vunpack.c.0.s8 %v1399
          %v1401 = vlaneseq
          %v1402 = vshrl.u32 %v1401, 7
          %v1403 = vsub.s32 %v1400, %v1402
          %v1404 = vrot.slane %v1397, %v1403
          %v1406 = vmul.f32 %v335, %v1404
          %v1407 = vadd.f32 %v1371, %v1406
          %v1408 = vmul.f32 %v355, %v1407
          %v1409 = vadd.f32 %v1161, %v1408
          %1410 = vrot.lane.b32.xlu0 %v282, 112
          %v1411 = vpop.permute.xlu0 %1410
          %1412 = vrot.lane.b32.xlu0 %v283, 112
          %v1413 = vpop.permute.xlu0 %1412
          %vm1414 = vcmp.lt.s32.totalorder %v376, 112
          %v1415 = vsel %vm1414, %v1411, %v1413
          %v1416 = vsel %vm1414, %v1413, %v1411
          %1417 = vrot.lane.b32.xlu0 %v291, 112
          %v1418 = vpop.permute.xlu0 %1417
          %1419 = vrot.lane.b32.xlu0 %v297, 112
          %v1420 = vpop.permute.xlu0 %1419
          %v1421 = vsel %vm1414, %v1418, %v1420
          %v1422 = vsel %vm1414, %v1420, %v1418
          %s1423 = sld [smem:[#allocation4 + $0x1c]]
          %v1424 = vstv %s1423
          %v1425 = vmul.f32 %v1424, %v1415
          %v1426 = vmul.f32 %v1424, %v1416
          %s1427 = sld [smem:[#allocation4 + $0x4d]]
          %v1428 = vstv %s1427
          %v1429 = vmul.f32 %v1428, %v1421
          %v1430 = vmul.f32 %v1428, %v1422
          %v1431 = vadd.f32 %v1425, %v1429
          %v1432 = vadd.f32 %v1426, %v1430
          %1433 = vrot.lane.b32.xlu0 %v1431, 3
          %v1434 = vpop.permute.xlu0 %1433
          %1435 = vrot.lane.b32.xlu0 %v1432, 3
          %v1436 = vpop.permute.xlu0 %1435
          %v1437 = vsel %vm400, %v1434, %v1436
          %v1438 = vsel %vm400, %v1436, %v1434
          %v1441 = vcombine.low %v1438, %v1437
          %v1443 = vunpack.c.l.s4 1966171168
          %v1444 = vunpack.c.0.s8 %v1443
          %v1445 = vlaneseq
          %v1446 = vshrl.u32 %v1445, 7
          %v1447 = vsub.s32 %v1444, %v1446
          %v1448 = vrot.slane %v1441, %v1447
          %v1450 = vunpack.c.l.s4 1966171168
          %v1451 = vunpack.c.0.s8 %v1450
          %v1452 = vlaneseq
          %v1453 = vshrl.u32 %v1452, 7
          %v1454 = vsub.s32 %v1451, %v1453
          %v1455 = vrot.slane %v1448, %v1454
          %v1457 = vmul.f32 %v305, %v1455
          %v1458 = vadd.f32 %v1457, 0.0
          %s1459 = sld [smem:[#allocation4 + $0x1d]]
          %v1460 = vstv %s1459
          %v1461 = vmul.f32 %v1460, %v1415
          %v1462 = vmul.f32 %v1460, %v1416
          %s1463 = sld [smem:[#allocation4 + $0x4e]]
          %v1464 = vstv %s1463
          %v1465 = vmul.f32 %v1464, %v1421
          %v1466 = vmul.f32 %v1464, %v1422
          %v1467 = vadd.f32 %v1461, %v1465
          %v1468 = vadd.f32 %v1462, %v1466
          %1469 = vrot.lane.b32.xlu0 %v1467, 2
          %v1470 = vpop.permute.xlu0 %1469
          %1471 = vrot.lane.b32.xlu0 %v1468, 2
          %v1472 = vpop.permute.xlu0 %1471
          %v1473 = vsel %vm437, %v1470, %v1472
          %v1474 = vsel %vm437, %v1472, %v1470
          %v1477 = vcombine.low %v1474, %v1473
          %v1479 = vunpack.c.l.s4 1966171168
          %v1480 = vunpack.c.0.s8 %v1479
          %v1481 = vlaneseq
          %v1482 = vshrl.u32 %v1481, 7
          %v1483 = vsub.s32 %v1480, %v1482
          %v1484 = vrot.slane %v1477, %v1483
          %v1486 = vunpack.c.l.s4 1966171168
          %v1487 = vunpack.c.0.s8 %v1486
          %v1488 = vlaneseq
          %v1489 = vshrl.u32 %v1488, 7
          %v1490 = vsub.s32 %v1487, %v1489
          %v1491 = vrot.slane %v1484, %v1490
          %v1493 = vmul.f32 %v310, %v1491
          %v1494 = vadd.f32 %v1458, %v1493
          %s1495 = sld [smem:[#allocation4 + $0x1e]]
          %v1496 = vstv %s1495
          %v1497 = vmul.f32 %v1496, %v1415
          %v1498 = vmul.f32 %v1496, %v1416
          %s1499 = sld [smem:[#allocation4 + $0x4f]]
          %v1500 = vstv %s1499
          %v1501 = vmul.f32 %v1500, %v1421
          %v1502 = vmul.f32 %v1500, %v1422
          %v1503 = vadd.f32 %v1497, %v1501
          %v1504 = vadd.f32 %v1498, %v1502
          %1505 = vrot.lane.b32.xlu0 %v1503, 1
          %v1506 = vpop.permute.xlu0 %1505
          %1507 = vrot.lane.b32.xlu0 %v1504, 1
          %v1508 = vpop.permute.xlu0 %1507
          %v1509 = vsel %vm474, %v1506, %v1508
          %v1510 = vsel %vm474, %v1508, %v1506
          %v1513 = vcombine.low %v1510, %v1509
          %v1515 = vunpack.c.l.s4 1966171168
          %v1516 = vunpack.c.0.s8 %v1515
          %v1517 = vlaneseq
          %v1518 = vshrl.u32 %v1517, 7
          %v1519 = vsub.s32 %v1516, %v1518
          %v1520 = vrot.slane %v1513, %v1519
          %v1522 = vunpack.c.l.s4 1966171168
          %v1523 = vunpack.c.0.s8 %v1522
          %v1524 = vlaneseq
          %v1525 = vshrl.u32 %v1524, 7
          %v1526 = vsub.s32 %v1523, %v1525
          %v1527 = vrot.slane %v1520, %v1526
          %v1529 = vmul.f32 %v315, %v1527
          %v1530 = vadd.f32 %v1494, %v1529
          %s1531 = sld [smem:[#allocation4 + $0x1f]]
          %v1532 = vstv %s1531
          %v1533 = vmul.f32 %v1532, %v1415
          %v1534 = vmul.f32 %v1532, %v1416
          %s1535 = sld [smem:[#allocation4 + $0x50]]
          %v1536 = vstv %s1535
          %v1537 = vmul.f32 %v1536, %v1421
          %v1538 = vmul.f32 %v1536, %v1422
          %v1539 = vadd.f32 %v1533, %v1537
          %v1540 = vadd.f32 %v1534, %v1538
          %v1543 = vcombine.low %v1539, %v1540
          %v1545 = vunpack.c.l.s4 1966171168
          %v1546 = vunpack.c.0.s8 %v1545
          %v1547 = vlaneseq
          %v1548 = vshrl.u32 %v1547, 7
          %v1549 = vsub.s32 %v1546, %v1548
          %v1550 = vrot.slane %v1543, %v1549
          %v1552 = vunpack.c.l.s4 1966171168
          %v1553 = vunpack.c.0.s8 %v1552
          %v1554 = vlaneseq
          %v1555 = vshrl.u32 %v1554, 7
          %v1556 = vsub.s32 %v1553, %v1555
          %v1557 = vrot.slane %v1550, %v1556
          %v1559 = vmul.f32 %v320, %v1557
          %v1560 = vadd.f32 %v1530, %v1559
          %s1561 = sld [smem:[#allocation4 + $0x20]]
          %v1562 = vstv %s1561
          %v1563 = vmul.f32 %v1562, %v1415
          %v1564 = vmul.f32 %v1562, %v1416
          %s1565 = sld [smem:[#allocation4 + $0x51]]
          %v1566 = vstv %s1565
          %v1567 = vmul.f32 %v1566, %v1421
          %v1568 = vmul.f32 %v1566, %v1422
          %v1569 = vadd.f32 %v1563, %v1567
          %v1570 = vadd.f32 %v1564, %v1568
          %1571 = vrot.lane.b32.xlu0 %v1569, 127
          %v1572 = vpop.permute.xlu0 %1571
          %1573 = vrot.lane.b32.xlu0 %v1570, 127
          %v1574 = vpop.permute.xlu0 %1573
          %v1575 = vsel %vm541, %v1572, %v1574
          %v1576 = vsel %vm541, %v1574, %v1572
          %v1579 = vcombine.low %v1575, %v1576
          %v1581 = vunpack.c.l.s4 1966171168
          %v1582 = vunpack.c.0.s8 %v1581
          %v1583 = vlaneseq
          %v1584 = vshrl.u32 %v1583, 7
          %v1585 = vsub.s32 %v1582, %v1584
          %v1586 = vrot.slane %v1579, %v1585
          %v1588 = vunpack.c.l.s4 1966171168
          %v1589 = vunpack.c.0.s8 %v1588
          %v1590 = vlaneseq
          %v1591 = vshrl.u32 %v1590, 7
          %v1592 = vsub.s32 %v1589, %v1591
          %v1593 = vrot.slane %v1586, %v1592
          %v1595 = vmul.f32 %v325, %v1593
          %v1596 = vadd.f32 %v1560, %v1595
          %s1597 = sld [smem:[#allocation4 + $0x21]]
          %v1598 = vstv %s1597
          %v1599 = vmul.f32 %v1598, %v1415
          %v1600 = vmul.f32 %v1598, %v1416
          %s1601 = sld [smem:[#allocation4 + $0x52]]
          %v1602 = vstv %s1601
          %v1603 = vmul.f32 %v1602, %v1421
          %v1604 = vmul.f32 %v1602, %v1422
          %v1605 = vadd.f32 %v1599, %v1603
          %v1606 = vadd.f32 %v1600, %v1604
          %1607 = vrot.lane.b32.xlu0 %v1605, 126
          %v1608 = vpop.permute.xlu0 %1607
          %1609 = vrot.lane.b32.xlu0 %v1606, 126
          %v1610 = vpop.permute.xlu0 %1609
          %v1611 = vsel %vm578, %v1608, %v1610
          %v1612 = vsel %vm578, %v1610, %v1608
          %v1615 = vcombine.low %v1611, %v1612
          %v1617 = vunpack.c.l.s4 1966171168
          %v1618 = vunpack.c.0.s8 %v1617
          %v1619 = vlaneseq
          %v1620 = vshrl.u32 %v1619, 7
          %v1621 = vsub.s32 %v1618, %v1620
          %v1622 = vrot.slane %v1615, %v1621
          %v1624 = vunpack.c.l.s4 1966171168
          %v1625 = vunpack.c.0.s8 %v1624
          %v1626 = vlaneseq
          %v1627 = vshrl.u32 %v1626, 7
          %v1628 = vsub.s32 %v1625, %v1627
          %v1629 = vrot.slane %v1622, %v1628
          %v1631 = vmul.f32 %v330, %v1629
          %v1632 = vadd.f32 %v1596, %v1631
          %s1633 = sld [smem:[#allocation4 + $0x22]]
          %v1634 = vstv %s1633
          %v1635 = vmul.f32 %v1634, %v1415
          %v1636 = vmul.f32 %v1634, %v1416
          %s1637 = sld [smem:[#allocation4 + $0x53]]
          %v1638 = vstv %s1637
          %v1639 = vmul.f32 %v1638, %v1421
          %v1640 = vmul.f32 %v1638, %v1422
          %v1641 = vadd.f32 %v1635, %v1639
          %v1642 = vadd.f32 %v1636, %v1640
          %1643 = vrot.lane.b32.xlu0 %v1641, 125
          %v1644 = vpop.permute.xlu0 %1643
          %1645 = vrot.lane.b32.xlu0 %v1642, 125
          %v1646 = vpop.permute.xlu0 %1645
          %v1647 = vsel %vm615, %v1644, %v1646
          %v1648 = vsel %vm615, %v1646, %v1644
          %v1651 = vcombine.low %v1647, %v1648
          %v1653 = vunpack.c.l.s4 1966171168
          %v1654 = vunpack.c.0.s8 %v1653
          %v1655 = vlaneseq
          %v1656 = vshrl.u32 %v1655, 7
          %v1657 = vsub.s32 %v1654, %v1656
          %v1658 = vrot.slane %v1651, %v1657
          %v1660 = vunpack.c.l.s4 1966171168
          %v1661 = vunpack.c.0.s8 %v1660
          %v1662 = vlaneseq
          %v1663 = vshrl.u32 %v1662, 7
          %v1664 = vsub.s32 %v1661, %v1663
          %v1665 = vrot.slane %v1658, %v1664
          %v1667 = vmul.f32 %v335, %v1665
          %v1668 = vadd.f32 %v1632, %v1667
          %v1669 = vmul.f32 %v360, %v1668
          %v1670 = vadd.f32 %v1409, %v1669
          %1671 = vrot.lane.b32.xlu0 %v282, 96
          %v1672 = vpop.permute.xlu0 %1671
          %1673 = vrot.lane.b32.xlu0 %v283, 96
          %v1674 = vpop.permute.xlu0 %1673
          %vm1675 = vcmp.lt.s32.totalorder %v376, 96
          %v1676 = vsel %vm1675, %v1672, %v1674
          %v1677 = vsel %vm1675, %v1674, %v1672
          %1678 = vrot.lane.b32.xlu0 %v291, 96
          %v1679 = vpop.permute.xlu0 %1678
          %1680 = vrot.lane.b32.xlu0 %v297, 96
          %v1681 = vpop.permute.xlu0 %1680
          %v1682 = vsel %vm1675, %v1679, %v1681
          %v1683 = vsel %vm1675, %v1681, %v1679
          %s1684 = sld [smem:[#allocation4 + $0x23]]
          %v1685 = vstv %s1684
          %v1686 = vmul.f32 %v1685, %v1676
          %v1687 = vmul.f32 %v1685, %v1677
          %s1688 = sld [smem:[#allocation4 + $0x54]]
          %v1689 = vstv %s1688
          %v1690 = vmul.f32 %v1689, %v1682
          %v1691 = vmul.f32 %v1689, %v1683
          %v1692 = vadd.f32 %v1686, %v1690
          %v1693 = vadd.f32 %v1687, %v1691
          %1694 = vrot.lane.b32.xlu0 %v1692, 3
          %v1695 = vpop.permute.xlu0 %1694
          %1696 = vrot.lane.b32.xlu0 %v1693, 3
          %v1697 = vpop.permute.xlu0 %1696
          %v1698 = vsel %vm400, %v1695, %v1697
          %v1699 = vsel %vm400, %v1697, %v1695
          %v1702 = vcombine.low %v1699, %v1698
          %v1704 = vunpack.c.l.s4 1966171168
          %v1705 = vunpack.c.0.s8 %v1704
          %v1706 = vlaneseq
          %v1707 = vshrl.u32 %v1706, 7
          %v1708 = vsub.s32 %v1705, %v1707
          %v1709 = vrot.slane %v1702, %v1708
          %v1711 = vunpack.c.l.s4 1966171168
          %v1712 = vunpack.c.0.s8 %v1711
          %v1713 = vlaneseq
          %v1714 = vshrl.u32 %v1713, 7
          %v1715 = vsub.s32 %v1712, %v1714
          %v1716 = vrot.slane %v1709, %v1715
          %v1718 = vmul.f32 %v305, %v1716
          %v1719 = vadd.f32 %v1718, 0.0
          %s1720 = sld [smem:[#allocation4 + $0x24]]
          %v1721 = vstv %s1720
          %v1722 = vmul.f32 %v1721, %v1676
          %v1723 = vmul.f32 %v1721, %v1677
          %s1724 = sld [smem:[#allocation4 + $0x55]]
          %v1725 = vstv %s1724
          %v1726 = vmul.f32 %v1725, %v1682
          %v1727 = vmul.f32 %v1725, %v1683
          %v1728 = vadd.f32 %v1722, %v1726
          %v1729 = vadd.f32 %v1723, %v1727
          %1730 = vrot.lane.b32.xlu0 %v1728, 2
          %v1731 = vpop.permute.xlu0 %1730
          %1732 = vrot.lane.b32.xlu0 %v1729, 2
          %v1733 = vpop.permute.xlu0 %1732
          %v1734 = vsel %vm437, %v1731, %v1733
          %v1735 = vsel %vm437, %v1733, %v1731
          %v1738 = vcombine.low %v1735, %v1734
          %v1740 = vunpack.c.l.s4 1966171168
          %v1741 = vunpack.c.0.s8 %v1740
          %v1742 = vlaneseq
          %v1743 = vshrl.u32 %v1742, 7
          %v1744 = vsub.s32 %v1741, %v1743
          %v1745 = vrot.slane %v1738, %v1744
          %v1747 = vunpack.c.l.s4 1966171168
          %v1748 = vunpack.c.0.s8 %v1747
          %v1749 = vlaneseq
          %v1750 = vshrl.u32 %v1749, 7
          %v1751 = vsub.s32 %v1748, %v1750
          %v1752 = vrot.slane %v1745, %v1751
          %v1754 = vmul.f32 %v310, %v1752
          %v1755 = vadd.f32 %v1719, %v1754
          %s1756 = sld [smem:[#allocation4 + $0x25]]
          %v1757 = vstv %s1756
          %v1758 = vmul.f32 %v1757, %v1676
          %v1759 = vmul.f32 %v1757, %v1677
          %s1760 = sld [smem:[#allocation4 + $0x56]]
          %v1761 = vstv %s1760
          %v1762 = vmul.f32 %v1761, %v1682
          %v1763 = vmul.f32 %v1761, %v1683
          %v1764 = vadd.f32 %v1758, %v1762
          %v1765 = vadd.f32 %v1759, %v1763
          %1766 = vrot.lane.b32.xlu0 %v1764, 1
          %v1767 = vpop.permute.xlu0 %1766
          %1768 = vrot.lane.b32.xlu0 %v1765, 1
          %v1769 = vpop.permute.xlu0 %1768
          %v1770 = vsel %vm474, %v1767, %v1769
          %v1771 = vsel %vm474, %v1769, %v1767
          %v1774 = vcombine.low %v1771, %v1770
          %v1776 = vunpack.c.l.s4 1966171168
          %v1777 = vunpack.c.0.s8 %v1776
          %v1778 = vlaneseq
          %v1779 = vshrl.u32 %v1778, 7
          %v1780 = vsub.s32 %v1777, %v1779
          %v1781 = vrot.slane %v1774, %v1780
          %v1783 = vunpack.c.l.s4 1966171168
          %v1784 = vunpack.c.0.s8 %v1783
          %v1785 = vlaneseq
          %v1786 = vshrl.u32 %v1785, 7
          %v1787 = vsub.s32 %v1784, %v1786
          %v1788 = vrot.slane %v1781, %v1787
          %v1790 = vmul.f32 %v315, %v1788
          %v1791 = vadd.f32 %v1755, %v1790
          %s1792 = sld [smem:[#allocation4 + $0x26]]
          %v1793 = vstv %s1792
          %v1794 = vmul.f32 %v1793, %v1676
          %v1795 = vmul.f32 %v1793, %v1677
          %s1796 = sld [smem:[#allocation4 + $0x57]]
          %v1797 = vstv %s1796
          %v1798 = vmul.f32 %v1797, %v1682
          %v1799 = vmul.f32 %v1797, %v1683
          %v1800 = vadd.f32 %v1794, %v1798
          %v1801 = vadd.f32 %v1795, %v1799
          %v1804 = vcombine.low %v1800, %v1801
          %v1806 = vunpack.c.l.s4 1966171168
          %v1807 = vunpack.c.0.s8 %v1806
          %v1808 = vlaneseq
          %v1809 = vshrl.u32 %v1808, 7
          %v1810 = vsub.s32 %v1807, %v1809
          %v1811 = vrot.slane %v1804, %v1810
          %v1813 = vunpack.c.l.s4 1966171168
          %v1814 = vunpack.c.0.s8 %v1813
          %v1815 = vlaneseq
          %v1816 = vshrl.u32 %v1815, 7
          %v1817 = vsub.s32 %v1814, %v1816
          %v1818 = vrot.slane %v1811, %v1817
          %v1820 = vmul.f32 %v320, %v1818
          %v1821 = vadd.f32 %v1791, %v1820
          %s1822 = sld [smem:[#allocation4 + $0x27]]
          %v1823 = vstv %s1822
          %v1824 = vmul.f32 %v1823, %v1676
          %v1825 = vmul.f32 %v1823, %v1677
          %s1826 = sld [smem:[#allocation4 + $0x58]]
          %v1827 = vstv %s1826
          %v1828 = vmul.f32 %v1827, %v1682
          %v1829 = vmul.f32 %v1827, %v1683
          %v1830 = vadd.f32 %v1824, %v1828
          %v1831 = vadd.f32 %v1825, %v1829
          %1832 = vrot.lane.b32.xlu0 %v1830, 127
          %v1833 = vpop.permute.xlu0 %1832
          %1834 = vrot.lane.b32.xlu0 %v1831, 127
          %v1835 = vpop.permute.xlu0 %1834
          %v1836 = vsel %vm541, %v1833, %v1835
          %v1837 = vsel %vm541, %v1835, %v1833
          %v1840 = vcombine.low %v1836, %v1837
          %v1842 = vunpack.c.l.s4 1966171168
          %v1843 = vunpack.c.0.s8 %v1842
          %v1844 = vlaneseq
          %v1845 = vshrl.u32 %v1844, 7
          %v1846 = vsub.s32 %v1843, %v1845
          %v1847 = vrot.slane %v1840, %v1846
          %v1849 = vunpack.c.l.s4 1966171168
          %v1850 = vunpack.c.0.s8 %v1849
          %v1851 = vlaneseq
          %v1852 = vshrl.u32 %v1851, 7
          %v1853 = vsub.s32 %v1850, %v1852
          %v1854 = vrot.slane %v1847, %v1853
          %v1856 = vmul.f32 %v325, %v1854
          %v1857 = vadd.f32 %v1821, %v1856
          %s1858 = sld [smem:[#allocation4 + $0x28]]
          %v1859 = vstv %s1858
          %v1860 = vmul.f32 %v1859, %v1676
          %v1861 = vmul.f32 %v1859, %v1677
          %s1862 = sld [smem:[#allocation4 + $0x59]]
          %v1863 = vstv %s1862
          %v1864 = vmul.f32 %v1863, %v1682
          %v1865 = vmul.f32 %v1863, %v1683
          %v1866 = vadd.f32 %v1860, %v1864
          %v1867 = vadd.f32 %v1861, %v1865
          %1868 = vrot.lane.b32.xlu0 %v1866, 126
          %v1869 = vpop.permute.xlu0 %1868
          %1870 = vrot.lane.b32.xlu0 %v1867, 126
          %v1871 = vpop.permute.xlu0 %1870
          %v1872 = vsel %vm578, %v1869, %v1871
          %v1873 = vsel %vm578, %v1871, %v1869
          %v1876 = vcombine.low %v1872, %v1873
          %v1878 = vunpack.c.l.s4 1966171168
          %v1879 = vunpack.c.0.s8 %v1878
          %v1880 = vlaneseq
          %v1881 = vshrl.u32 %v1880, 7
          %v1882 = vsub.s32 %v1879, %v1881
          %v1883 = vrot.slane %v1876, %v1882
          %v1885 = vunpack.c.l.s4 1966171168
          %v1886 = vunpack.c.0.s8 %v1885
          %v1887 = vlaneseq
          %v1888 = vshrl.u32 %v1887, 7
          %v1889 = vsub.s32 %v1886, %v1888
          %v1890 = vrot.slane %v1883, %v1889
          %v1892 = vmul.f32 %v330, %v1890
          %v1893 = vadd.f32 %v1857, %v1892
          %s1894 = sld [smem:[#allocation4 + $0x29]]
          %v1895 = vstv %s1894
          %v1896 = vmul.f32 %v1895, %v1676
          %v1897 = vmul.f32 %v1895, %v1677
          %s1898 = sld [smem:[#allocation4 + $0x5a]]
          %v1899 = vstv %s1898
          %v1900 = vmul.f32 %v1899, %v1682
          %v1901 = vmul.f32 %v1899, %v1683
          %v1902 = vadd.f32 %v1896, %v1900
          %v1903 = vadd.f32 %v1897, %v1901
          %1904 = vrot.lane.b32.xlu0 %v1902, 125
          %v1905 = vpop.permute.xlu0 %1904
          %1906 = vrot.lane.b32.xlu0 %v1903, 125
          %v1907 = vpop.permute.xlu0 %1906
          %v1908 = vsel %vm615, %v1905, %v1907
          %v1909 = vsel %vm615, %v1907, %v1905
          %v1912 = vcombine.low %v1908, %v1909
          %v1914 = vunpack.c.l.s4 1966171168
          %v1915 = vunpack.c.0.s8 %v1914
          %v1916 = vlaneseq
          %v1917 = vshrl.u32 %v1916, 7
          %v1918 = vsub.s32 %v1915, %v1917
          %v1919 = vrot.slane %v1912, %v1918
          %v1921 = vunpack.c.l.s4 1966171168
          %v1922 = vunpack.c.0.s8 %v1921
          %v1923 = vlaneseq
          %v1924 = vshrl.u32 %v1923, 7
          %v1925 = vsub.s32 %v1922, %v1924
          %v1926 = vrot.slane %v1919, %v1925
          %v1928 = vmul.f32 %v335, %v1926
          %v1929 = vadd.f32 %v1893, %v1928
          %v1930 = vmul.f32 %v365, %v1929
          %v1931 = vadd.f32 %v1670, %v1930
          %1932 = vrot.lane.b32.xlu0 %v282, 80
          %v1933 = vpop.permute.xlu0 %1932
          %1934 = vrot.lane.b32.xlu0 %v283, 80
          %v1935 = vpop.permute.xlu0 %1934
          %vm1936 = vcmp.lt.s32.totalorder %v376, 80
          %v1937 = vsel %vm1936, %v1933, %v1935
          %v1938 = vsel %vm1936, %v1935, %v1933
          %1939 = vrot.lane.b32.xlu0 %v291, 80
          %v1940 = vpop.permute.xlu0 %1939
          %1941 = vrot.lane.b32.xlu0 %v297, 80
          %v1942 = vpop.permute.xlu0 %1941
          %v1943 = vsel %vm1936, %v1940, %v1942
          %v1944 = vsel %vm1936, %v1942, %v1940
          %s1945 = sld [smem:[#allocation4 + $0x2a]]
          %v1946 = vstv %s1945
          %v1947 = vmul.f32 %v1946, %v1937
          %v1948 = vmul.f32 %v1946, %v1938
          %s1949 = sld [smem:[#allocation4 + $0x5b]]
          %v1950 = vstv %s1949
          %v1951 = vmul.f32 %v1950, %v1943
          %v1952 = vmul.f32 %v1950, %v1944
          %v1953 = vadd.f32 %v1947, %v1951
          %v1954 = vadd.f32 %v1948, %v1952
          %1955 = vrot.lane.b32.xlu0 %v1953, 3
          %v1956 = vpop.permute.xlu0 %1955
          %1957 = vrot.lane.b32.xlu0 %v1954, 3
          %v1958 = vpop.permute.xlu0 %1957
          %v1959 = vsel %vm400, %v1956, %v1958
          %v1960 = vsel %vm400, %v1958, %v1956
          %v1963 = vcombine.low %v1960, %v1959
          %v1965 = vunpack.c.l.s4 1966171168
          %v1966 = vunpack.c.0.s8 %v1965
          %v1967 = vlaneseq
          %v1968 = vshrl.u32 %v1967, 7
          %v1969 = vsub.s32 %v1966, %v1968
          %v1970 = vrot.slane %v1963, %v1969
          %v1972 = vunpack.c.l.s4 1966171168
          %v1973 = vunpack.c.0.s8 %v1972
          %v1974 = vlaneseq
          %v1975 = vshrl.u32 %v1974, 7
          %v1976 = vsub.s32 %v1973, %v1975
          %v1977 = vrot.slane %v1970, %v1976
          %v1979 = vmul.f32 %v305, %v1977
          %v1980 = vadd.f32 %v1979, 0.0
          %s1981 = sld [smem:[#allocation4 + $0x2b]]
          %v1982 = vstv %s1981
          %v1983 = vmul.f32 %v1982, %v1937
          %v1984 = vmul.f32 %v1982, %v1938
          %s1985 = sld [smem:[#allocation4 + $0x5c]]
          %v1986 = vstv %s1985
          %v1987 = vmul.f32 %v1986, %v1943
          %v1988 = vmul.f32 %v1986, %v1944
          %v1989 = vadd.f32 %v1983, %v1987
          %v1990 = vadd.f32 %v1984, %v1988
          %1991 = vrot.lane.b32.xlu0 %v1989, 2
          %v1992 = vpop.permute.xlu0 %1991
          %1993 = vrot.lane.b32.xlu0 %v1990, 2
          %v1994 = vpop.permute.xlu0 %1993
          %v1995 = vsel %vm437, %v1992, %v1994
          %v1996 = vsel %vm437, %v1994, %v1992
          %v1999 = vcombine.low %v1996, %v1995
          %v2001 = vunpack.c.l.s4 1966171168
          %v2002 = vunpack.c.0.s8 %v2001
          %v2003 = vlaneseq
          %v2004 = vshrl.u32 %v2003, 7
          %v2005 = vsub.s32 %v2002, %v2004
          %v2006 = vrot.slane %v1999, %v2005
          %v2008 = vunpack.c.l.s4 1966171168
          %v2009 = vunpack.c.0.s8 %v2008
          %v2010 = vlaneseq
          %v2011 = vshrl.u32 %v2010, 7
          %v2012 = vsub.s32 %v2009, %v2011
          %v2013 = vrot.slane %v2006, %v2012
          %v2015 = vmul.f32 %v310, %v2013
          %v2016 = vadd.f32 %v1980, %v2015
          %s2017 = sld [smem:[#allocation4 + $0x2c]]
          %v2018 = vstv %s2017
          %v2019 = vmul.f32 %v2018, %v1937
          %v2020 = vmul.f32 %v2018, %v1938
          %s2021 = sld [smem:[#allocation4 + $0x5d]]
          %v2022 = vstv %s2021
          %v2023 = vmul.f32 %v2022, %v1943
          %v2024 = vmul.f32 %v2022, %v1944
          %v2025 = vadd.f32 %v2019, %v2023
          %v2026 = vadd.f32 %v2020, %v2024
          %2027 = vrot.lane.b32.xlu0 %v2025, 1
          %v2028 = vpop.permute.xlu0 %2027
          %2029 = vrot.lane.b32.xlu0 %v2026, 1
          %v2030 = vpop.permute.xlu0 %2029
          %v2031 = vsel %vm474, %v2028, %v2030
          %v2032 = vsel %vm474, %v2030, %v2028
          %v2035 = vcombine.low %v2032, %v2031
          %v2037 = vunpack.c.l.s4 1966171168
          %v2038 = vunpack.c.0.s8 %v2037
          %v2039 = vlaneseq
          %v2040 = vshrl.u32 %v2039, 7
          %v2041 = vsub.s32 %v2038, %v2040
          %v2042 = vrot.slane %v2035, %v2041
          %v2044 = vunpack.c.l.s4 1966171168
          %v2045 = vunpack.c.0.s8 %v2044
          %v2046 = vlaneseq
          %v2047 = vshrl.u32 %v2046, 7
          %v2048 = vsub.s32 %v2045, %v2047
          %v2049 = vrot.slane %v2042, %v2048
          %v2051 = vmul.f32 %v315, %v2049
          %v2052 = vadd.f32 %v2016, %v2051
          %s2053 = sld [smem:[#allocation4 + $0x2d]]
          %v2054 = vstv %s2053
          %v2055 = vmul.f32 %v2054, %v1937
          %v2056 = vmul.f32 %v2054, %v1938
          %s2057 = sld [smem:[#allocation4 + $0x5e]]
          %v2058 = vstv %s2057
          %v2059 = vmul.f32 %v2058, %v1943
          %v2060 = vmul.f32 %v2058, %v1944
          %v2061 = vadd.f32 %v2055, %v2059
          %v2062 = vadd.f32 %v2056, %v2060
          %v2065 = vcombine.low %v2061, %v2062
          %v2067 = vunpack.c.l.s4 1966171168
          %v2068 = vunpack.c.0.s8 %v2067
          %v2069 = vlaneseq
          %v2070 = vshrl.u32 %v2069, 7
          %v2071 = vsub.s32 %v2068, %v2070
          %v2072 = vrot.slane %v2065, %v2071
          %v2074 = vunpack.c.l.s4 1966171168
          %v2075 = vunpack.c.0.s8 %v2074
          %v2076 = vlaneseq
          %v2077 = vshrl.u32 %v2076, 7
          %v2078 = vsub.s32 %v2075, %v2077
          %v2079 = vrot.slane %v2072, %v2078
          %v2081 = vmul.f32 %v320, %v2079
          %v2082 = vadd.f32 %v2052, %v2081
          %s2083 = sld [smem:[#allocation4 + $0x2e]]
          %v2084 = vstv %s2083
          %v2085 = vmul.f32 %v2084, %v1937
          %v2086 = vmul.f32 %v2084, %v1938
          %s2087 = sld [smem:[#allocation4 + $0x5f]]
          %v2088 = vstv %s2087
          %v2089 = vmul.f32 %v2088, %v1943
          %v2090 = vmul.f32 %v2088, %v1944
          %v2091 = vadd.f32 %v2085, %v2089
          %v2092 = vadd.f32 %v2086, %v2090
          %2093 = vrot.lane.b32.xlu0 %v2091, 127
          %v2094 = vpop.permute.xlu0 %2093
          %2095 = vrot.lane.b32.xlu0 %v2092, 127
          %v2096 = vpop.permute.xlu0 %2095
          %v2097 = vsel %vm541, %v2094, %v2096
          %v2098 = vsel %vm541, %v2096, %v2094
          %v2101 = vcombine.low %v2097, %v2098
          %v2103 = vunpack.c.l.s4 1966171168
          %v2104 = vunpack.c.0.s8 %v2103
          %v2105 = vlaneseq
          %v2106 = vshrl.u32 %v2105, 7
          %v2107 = vsub.s32 %v2104, %v2106
          %v2108 = vrot.slane %v2101, %v2107
          %v2110 = vunpack.c.l.s4 1966171168
          %v2111 = vunpack.c.0.s8 %v2110
          %v2112 = vlaneseq
          %v2113 = vshrl.u32 %v2112, 7
          %v2114 = vsub.s32 %v2111, %v2113
          %v2115 = vrot.slane %v2108, %v2114
          %v2117 = vmul.f32 %v325, %v2115
          %v2118 = vadd.f32 %v2082, %v2117
          %s2119 = sld [smem:[#allocation4 + $0x2f]]
          %v2120 = vstv %s2119
          %v2121 = vmul.f32 %v2120, %v1937
          %v2122 = vmul.f32 %v2120, %v1938
          %s2123 = sld [smem:[#allocation4 + $0x60]]
          %v2124 = vstv %s2123
          %v2125 = vmul.f32 %v2124, %v1943
          %v2126 = vmul.f32 %v2124, %v1944
          %v2127 = vadd.f32 %v2121, %v2125
          %v2128 = vadd.f32 %v2122, %v2126
          %2129 = vrot.lane.b32.xlu0 %v2127, 126
          %v2130 = vpop.permute.xlu0 %2129
          %2131 = vrot.lane.b32.xlu0 %v2128, 126
          %v2132 = vpop.permute.xlu0 %2131
          %v2133 = vsel %vm578, %v2130, %v2132
          %v2134 = vsel %vm578, %v2132, %v2130
          %v2137 = vcombine.low %v2133, %v2134
          %v2139 = vunpack.c.l.s4 1966171168
          %v2140 = vunpack.c.0.s8 %v2139
          %v2141 = vlaneseq
          %v2142 = vshrl.u32 %v2141, 7
          %v2143 = vsub.s32 %v2140, %v2142
          %v2144 = vrot.slane %v2137, %v2143
          %v2146 = vunpack.c.l.s4 1966171168
          %v2147 = vunpack.c.0.s8 %v2146
          %v2148 = vlaneseq
          %v2149 = vshrl.u32 %v2148, 7
          %v2150 = vsub.s32 %v2147, %v2149
          %v2151 = vrot.slane %v2144, %v2150
          %v2153 = vmul.f32 %v330, %v2151
          %v2154 = vadd.f32 %v2118, %v2153
          %s2155 = sld [smem:[#allocation4 + $0x30]]
          %v2156 = vstv %s2155
          %v2157 = vmul.f32 %v2156, %v1937
          %v2158 = vmul.f32 %v2156, %v1938
          %s2159 = sld [smem:[#allocation4 + $0x61]]
          %v2160 = vstv %s2159
          %v2161 = vmul.f32 %v2160, %v1943
          %v2162 = vmul.f32 %v2160, %v1944
          %v2163 = vadd.f32 %v2157, %v2161
          %v2164 = vadd.f32 %v2158, %v2162
          %2165 = vrot.lane.b32.xlu0 %v2163, 125
          %v2166 = vpop.permute.xlu0 %2165
          %2167 = vrot.lane.b32.xlu0 %v2164, 125
          %v2168 = vpop.permute.xlu0 %2167
          %v2169 = vsel %vm615, %v2166, %v2168
          %v2170 = vsel %vm615, %v2168, %v2166
          %v2173 = vcombine.low %v2169, %v2170
          %v2175 = vunpack.c.l.s4 1966171168
          %v2176 = vunpack.c.0.s8 %v2175
          %v2177 = vlaneseq
          %v2178 = vshrl.u32 %v2177, 7
          %v2179 = vsub.s32 %v2176, %v2178
          %v2180 = vrot.slane %v2173, %v2179
          %v2182 = vunpack.c.l.s4 1966171168
          %v2183 = vunpack.c.0.s8 %v2182
          %v2184 = vlaneseq
          %v2185 = vshrl.u32 %v2184, 7
          %v2186 = vsub.s32 %v2183, %v2185
          %v2187 = vrot.slane %v2180, %v2186
          %v2189 = vmul.f32 %v335, %v2187
          %v2190 = vadd.f32 %v2154, %v2189
          %v2191 = vmul.f32 %v370, %v2190
          %v2192 = vadd.f32 %v1931, %v2191
          %v2193 = vxor.u32 %v2192, 2147483648
          %v2194 = vmul.f32 %v2193, 1.442695
          %v2195 = vpow.pop %v2194
          %v2196 = vadd.f32 %v2195, 1.0
          %v2197 = vrcp.pop %v2196
          %v2198 = vmul.f32 1.0, %v2197
          %v2199 = vlaneseq
          %vm2200 = vcmp.ge.s32.totalorder %v2199, 0
          %vm2201 = vcmp.lt.s32.totalorder %v2199, 256
          %vm2202 = vmand %vm2200, %vm2201
          %2203 = vst.msk [vmem:[%s227] sm:$0x3] %vm2202, %v2198
        $region52: #{tpu_custom_call.1} parent=31 // pred_fallthru
          _
        %s2204 = sand.u32 %s112, 1
        %s2205 = scalar_lea.sflag [#allocation6], %s2204
        %s2206 = sand.u32 %s112, 1
        %s2207 = smul.addr %s2206, 2
        %s2208 = scalar_lea.vmem [#allocation11], %s2207
        // Predicated region
        $region53: #{tpu_custom_call.1} parent=31 // pred_check
          %p2209 = pneg %p122
        $region54: #{tpu_custom_call.1} parent=31 // pred_check_branch
          %2211 = sbr.rel (%p2209) target = $region56
        $region55: #{tpu_custom_call.1} parent=31 // pred_region
          %s2213 = ssub.s32 32, 32
          %2214 = vsyncadd %s2205, %s2213
          %s2215 = smul.addr %s26, 2
          %s2216 = smul.addr %s2215, 16
          %s2217 = scalar_lea.hbm %s3, %s2216
          %s2219 = sshll.u32 %s2208, 4
          %s2220 = int_to_ptr.vmem [resolvable:$true] %s2219
          %2222 = dma.vmem_to_hbm [thread:$0]  %s2220, 32, %s2217, %s2205
        $region56: #{tpu_custom_call.1} parent=31 // pred_fallthru
          _
      $region32: #{tpu_custom_call.1} parent=5 // pred_fallthru
        _
      %p2223 = scmp.le.s32.totalorder 2, %s17
      // Predicated region
      $region57: #{tpu_custom_call.1} parent=5 // pred_check
        %p2224 = pneg %p2223
      $region58: #{tpu_custom_call.1} parent=5 // pred_check_branch
        %2226 = sbr.rel (%p2224) target = $region60
      $region59: #{tpu_custom_call.1} parent=5 // pred_region
        %s2227 = ssub.s32 %s17, 2
        // Predicated region
        $region61: #{tpu_custom_call.1} parent=59 // pred_check
          %p2228 = pneg %p128
        $region62: #{tpu_custom_call.1} parent=59 // pred_check_branch
          %2230 = sbr.rel (%p2228) target = $region64
        $region63: #{tpu_custom_call.1} parent=59 // pred_region
          %s2231 = sand.u32 %s113, 1
          %s2232 = scalar_lea.sflag [#allocation6], %s2231
          %s2233 = sand.u32 %s113, 1
          %s2234 = smul.addr %s2233, 2
          %s2235 = scalar_lea.vmem [#allocation11], %s2234
          %2236 = dma.done %s2232, 32
        $region64: #{tpu_custom_call.1} parent=59 // pred_fallthru
          _
      $region60: #{tpu_custom_call.1} parent=5 // pred_fallthru
        _
    $region6: #{tpu_custom_call.1} parent=1 // loop_footer
      %s21 = sadd.s32 1, %s17
    $region7: #{tpu_custom_call.1} parent=1 // loop_footer_branch
      %16 = sbr.rel target = $region3
    $region8: #{tpu_custom_call.1} parent=1 // loop_exit
      _
    %2237 = vsyncpa [#allocation5], 1
    %s2238 = scalar_lea.sflag [#allocation5], 1
    %2239 = vsyncpa %s2238, 1
    %2240 = vsyncpa [#allocation10], 1
    %s2241 = scalar_lea.sflag [#allocation10], 1
    %2242 = vsyncpa %s2241, 1
    %2243 = vsyncpa [#allocation6], 1
    %s2244 = scalar_lea.sflag [#allocation6], 1
    %2245 = vsyncpa %s2244, 1
    %2246 = vsyncpa [#allocation7], 1
    %s2247 = scalar_lea.sflag [#allocation7], 1
    %2248 = vsyncpa %s2247, 1

</llo_original>
